<compile_context>
chip_gen: v6e
topology: v6e:2x2x1
jax: 0.10.0
libtpu: 0.0.40
codegen_flags: <defaults>
</compile_context>

<pallas_src>
import time
import functools
import numpy as np
import jax
import jax.numpy as jnp
from jax.experimental import pallas as pl
from jax.experimental.pallas import tpu as pltpu


# ----------------------------- model config ---------------------------------
NUM_CLASSES = 1          # multi_pose: 1 class ("person")
NUM_JOINTS = 17
HEAD_CH = {
    "hm": NUM_CLASSES,
    "hm_hp": NUM_JOINTS,
    "wh": 2,
    "hps": 2 * NUM_JOINTS,
    "reg": 2,
    "hp_offset": 2,
}
# hm + hm_hp first so the 18 NMS channels are contiguous (weight columns are
# permuted into this order at load/creation time - zero runtime cost).
HEAD_ORDER = ("hm", "hm_hp", "wh", "hps", "reg", "hp_offset")
HEAD_OFF = {}
_c = 0
for _name in HEAD_ORDER:
    HEAD_OFF[_name] = _c
    _c += HEAD_CH[_name]
COUT = _c                    # 58
HID = 64                     # backbone feature channels
DOWN = 4                     # CenterNet output stride
CIN = 3 * DOWN * DOWN        # 48 (patchified input channels)

FUSED_PAD = 128              # [feat(64) | heads(58) | pad(6)] -> lane dense
assert HID + COUT <= FUSED_PAD


def _round_up(a, b):
    return (a + b - 1) // b * b


def _pick_tile_m(m16):
    """Largest tile <= 2048 dividing m16 while keeping >= 2 grid steps
    (so the 'parallel' axis can shard across v7x's 2 TensorCores)."""
    fallback = m16
    for t in (2048, 1024, 512, 256, 128, 64, 32, 16):
        if t <= m16 and m16 % t == 0:
            if m16 // t >= 2:
                return t
            fallback = t
    return fallback


class Opt:
    hm_hp = True
    mse_loss = False
    reg_offset = True
    reg_hp_offset = True
    flip_test = False
    debug = 0
    K = 8


# ------------------------- Pallas kernel A: heads ---------------------------
def head_kernel(x_ref, w1_ref, b1_ref, w2_ref, b2_ref, out_ref):
    # x: (TM, CIN) bf16 ; w1: (CIN, HID) bf16 ; w2: (HID, COUT) bf16
    # out: (TM, FUSED_PAD) f32  -> one lane-dense HBM writeback per tile.
    h = jnp.dot(x_ref[...], w1_ref[...], preferred_element_type=jnp.float32)
    h = jnp.maximum(h + b1_ref[...], 0.0)                     # ReLU feature, f32
    heads = (jnp.dot(h.astype(jnp.bfloat16), w2_ref[...],
                     preferred_element_type=jnp.float32) + b2_ref[...])
    out_ref[:, 0:HID] = h
    out_ref[:, HID:HID + COUT] = heads
    # lanes [HID+COUT, FUSED_PAD) are padding and never read downstream.


def run_heads(x_flat, w1, b1, w2, b2):
    """Fused backbone 1x1-conv + ReLU + all head 1x1-convs over M rows.

    Returns one (m_pad, 128) f32 array: [:, :HID] = feature, [:, HID:HID+COUT]
    = head channels.  HBM-write bound, so a single 128-lane f32 output (no
    dual padded outputs) is the main lever; MXU shape tuning is irrelevant.
    """
    M, cin = x_flat.shape
    m16 = _round_up(M, 16)                         # bf16 sublane packing
    tile_m = _pick_tile_m(m16)
    m_pad = m16

    x_bf = x_flat.astype(jnp.bfloat16)
    if m_pad != M:
        x_bf = jnp.pad(x_bf, ((0, m_pad - M), (0, 0)))

    fused = pl.pallas_call(
        head_kernel,
        out_shape=jax.ShapeDtypeStruct((m_pad, FUSED_PAD), jnp.float32),
        grid=(m_pad // tile_m,),
        in_specs=[
            pl.BlockSpec((tile_m, cin), lambda i: (i, 0)),
            pl.BlockSpec((cin, HID), lambda i: (0, 0)),    # weights stay
            pl.BlockSpec((1, HID), lambda i: (0, 0)),      # resident in VMEM
            pl.BlockSpec((HID, COUT), lambda i: (0, 0)),   # across the grid
            pl.BlockSpec((1, COUT), lambda i: (0, 0)),
        ],
        out_specs=pl.BlockSpec((tile_m, FUSED_PAD), lambda i: (i, 0)),
        compiler_params=pltpu.CompilerParams(
            dimension_semantics=("parallel",)),
    )(x_bf, w1.astype(jnp.bfloat16), b1.astype(jnp.float32),
      w2.astype(jnp.bfloat16), b2.astype(jnp.float32))
    return fused


# -------------------- Pallas kernel B: sigmoid + 3x3 NMS --------------------
def nms_kernel(hm_ref, out_ref):
    # One heatmap channel per grid step: block (1, H, W) f32 logits.
    s = jax.nn.sigmoid(hm_ref[...])
    H, W = s.shape[1], s.shape[2]
    NEG = jnp.float32(-1.0)            # < sigmoid(x) for all x  (== -inf pad)
    col = jax.lax.broadcasted_iota(jnp.int32, s.shape, 2)
    row = jax.lax.broadcasted_iota(jnp.int32, s.shape, 1)
    # separable 3x3 max: 1x3 along W (lane rolls on the XLU) ...
    left = jnp.where(col >= 1, pltpu.roll(s, 1, axis=2), NEG)          # x-1
    right = jnp.where(col <= W - 2, pltpu.roll(s, W - 1, axis=2), NEG)  # x+1
    hmax = jnp.maximum(s, jnp.maximum(left, right))
    # ... then 3x1 along H (sublane rolls)
    up = jnp.where(row >= 1, pltpu.roll(hmax, 1, axis=1), NEG)          # y-1
    down = jnp.where(row <= H - 2, pltpu.roll(hmax, H - 1, axis=1), NEG)  # y+1
    pooled = jnp.maximum(hmax, jnp.maximum(up, down))
    keep = (pooled == s).astype(s.dtype)      # exact-equality ties, like torch
    out_ref[...] = s * keep


def sigmoid_nms(hm_logits):
    """sigmoid + 3x3 max-pool NMS, one channel per grid step (parallel)."""
    C, H, W = hm_logits.shape
    return pl.pallas_call(
        nms_kernel,
        out_shape=jax.ShapeDtypeStruct((C, H, W), jnp.float32),
        grid=(C,),
        in_specs=[pl.BlockSpec((1, H, W), lambda c: (c, 0, 0))],
        out_specs=pl.BlockSpec((1, H, W), lambda c: (c, 0, 0)),
        compiler_params=pltpu.CompilerParams(
            dimension_semantics=("parallel",)),
    )(hm_logits)


# ------------------------- decode glue (plain JAX) --------------------------
def _gather_feat(feat, inds):
    # feat: (B, HW, C) channel-last, inds: (B, K) flat spatial -> (B, K, C)
    B, HW, C = feat.shape
    idx = jnp.broadcast_to(inds[:, :, None], (B, inds.shape[1], C))
    return jnp.take_along_axis(feat, idx, axis=1)


def _topk(scores, K):
    B, C, H, W = scores.shape
    flat = scores.reshape(B, C, H * W)
    topk_scores, topk_inds = jax.lax.top_k(flat, K)          # (B, C, K)
    topk_inds = topk_inds % (H * W)
    topk_ys = (topk_inds // W).astype(jnp.float32)
    topk_xs = (topk_inds % W).astype(jnp.float32)
    topk_score, topk_ind = jax.lax.top_k(topk_scores.reshape(B, -1), K)
    topk_clses = (topk_ind // K).astype(jnp.float32)

    def g(a):
        return jnp.take_along_axis(a.reshape(B, -1), topk_ind, axis=1)

    return topk_score, g(topk_inds), topk_clses, g(topk_ys), g(topk_xs)


def _topk_channel(scores, K):
    B, C, H, W = scores.shape
    flat = scores.reshape(B, C, H * W)
    topk_scores, topk_inds = jax.lax.top_k(flat, K)           # (B, C, K)
    topk_inds = topk_inds % (H * W)
    topk_ys = (topk_inds // W).astype(jnp.float32)
    topk_xs = (topk_inds % W).astype(jnp.float32)
    return topk_scores, topk_inds, topk_ys, topk_xs


def multi_pose_decode(hm_nms, wh, hps, reg, hm_hp_nms, hp_offset, K):
    # hm_nms: (B,1,H,W); hm_hp_nms: (B,J,H,W) | None;
    # wh/hps/reg/hp_offset: channel-last (B, HW, nch).
    B, C, H, W = hm_nms.shape
    J = NUM_JOINTS
    scores, inds, clses, ys, xs = _topk(hm_nms, K)

    kps = _gather_feat(hps, inds)                              # (B, K, 2J)
    kx = kps[..., 0::2] + xs[:, :, None]
    ky = kps[..., 1::2] + ys[:, :, None]
    kps = jnp.stack([kx, ky], axis=-1).reshape(B, K, 2 * J)

    if reg is not None:
        r = _gather_feat(reg, inds)
        xs_d = xs[:, :, None] + r[:, :, 0:1]
        ys_d = ys[:, :, None] + r[:, :, 1:2]
    else:
        xs_d = xs[:, :, None] + 0.5
        ys_d = ys[:, :, None] + 0.5

    whg = _gather_feat(wh, inds)
    bboxes = jnp.concatenate(
        [xs_d - whg[..., 0:1] / 2, ys_d - whg[..., 1:2] / 2,
         xs_d + whg[..., 0:1] / 2, ys_d + whg[..., 1:2] / 2], axis=2)

    if hm_hp_nms is not None:
        thresh = 0.1
        kpsj = kps.reshape(B, K, J, 2).transpose(0, 2, 1, 3)   # (B, J, K, 2)
        hm_score, hm_inds, hm_ys, hm_xs = _topk_channel(hm_hp_nms, K)
        if hp_offset is not None:
            off = _gather_feat(hp_offset, hm_inds.reshape(B, -1))
            off = off.reshape(B, J, K, 2)
            hm_xs = hm_xs + off[..., 0]
            hm_ys = hm_ys + off[..., 1]
        else:
            hm_xs = hm_xs + 0.5
            hm_ys = hm_ys + 0.5
        m = (hm_score > thresh).astype(jnp.float32)
        hm_score = (1.0 - m) * (-1.0) + m * hm_score
        hm_ys = (1.0 - m) * (-10000.0) + m * hm_ys
        hm_xs = (1.0 - m) * (-10000.0) + m * hm_xs
        hm_kps = jnp.stack([hm_xs, hm_ys], axis=-1)            # (B, J, K, 2)
        dist = jnp.sqrt(
            ((kpsj[:, :, :, None, :] - hm_kps[:, :, None, :, :]) ** 2).sum(-1))
        min_dist = dist.min(axis=3)                            # (B, J, K)
        min_ind = dist.argmin(axis=3)
        hm_score_sel = jnp.take_along_axis(hm_score, min_ind, axis=2)[..., None]
        hm_kps_sel = jnp.take_along_axis(
            hm_kps, jnp.broadcast_to(min_ind[..., None], (B, J, K, 2)), axis=2)
        min_dist = min_dist[..., None]
        # bbox-relative keypoint rejection, matching PyTorch multi_pose_decode
        l = bboxes[:, None, :, 0:1]                            # (B, 1, K, 1)
        t = bboxes[:, None, :, 1:2]
        r_ = bboxes[:, None, :, 2:3]
        b_ = bboxes[:, None, :, 3:4]
        bad = ((hm_kps_sel[..., 0:1] < l) | (hm_kps_sel[..., 0:1] > r_)
               | (hm_kps_sel[..., 1:2] < t) | (hm_kps_sel[..., 1:2] > b_)
               | (hm_score_sel < thresh)
               | (min_dist > jnp.maximum(b_ - t, r_ - l) * 0.3))
        bad = bad.astype(jnp.float32)
        kpsj = (1.0 - bad) * hm_kps_sel + bad * kpsj
        kps = kpsj.transpose(0, 2, 1, 3).reshape(B, K, 2 * J)

    detections = jnp.concatenate(
        [bboxes, scores[:, :, None], kps, clses[:, :, None]], axis=2)
    return detections


# ------------------------ fully-jitted forward core -------------------------
@functools.partial(jax.jit,
                   static_argnames=("K", "use_hm_hp", "use_reg", "use_hp_off"))
def forward_core(x_nchw, w1, b1, w2, b2, *, K, use_hm_hp, use_reg, use_hp_off):
    """heads (Pallas) -> sigmoid/NMS (Pallas) -> multi_pose_decode, one jit."""
    B, C, H, W = x_nchw.shape
    assert B == 1, "decode path assumes batch 1 (as in the PyTorch demo path)"
    Ho, Wo = H // DOWN, W // DOWN
    HWo = Ho * Wo
    M = B * HWo

    # patchify (pixel-unshuffle, stride 4) -> flattened NHWC rows (M, CIN)
    xp = x_nchw.reshape(B, C, Ho, DOWN, Wo, DOWN).transpose(0, 2, 4, 1, 3, 5)
    xp = xp.reshape(M, C * DOWN * DOWN).astype(jnp.float32)

    fused = run_heads(xp, w1, b1, w2, b2)[:M]   # (M, 128), no-op slice when
                                                # tile_m divides M (m_pad == M)

    feature_map = (fused[:, :HID].reshape(B, Ho, Wo, HID)
                   .transpose(0, 3, 1, 2))                    # NCHW, as module

    # stay channel-last for everything the decoder gathers from
    heads_blc = fused.reshape(B, HWo, FUSED_PAD)

    def head_ch(name):
        off = HID + HEAD_OFF[name]
        return heads_blc[..., off:off + HEAD_CH[name]]

    wh = head_ch("wh")
    hps = head_ch("hps")
    reg = head_ch("reg") if use_reg else None
    hp_offset = head_ch("hp_offset") if use_hp_off else None

    # hm + hm_hp are contiguous head channels (weight permutation), so the NMS
    # input is one slice - no concatenate / extra HBM pass.
    # TODO(synk): emitting these 18 channels in (C, M) layout straight from
    # the head kernel would also remove this transpose.
    n_hm = NUM_CLASSES + (NUM_JOINTS if use_hm_hp else 0)
    plane = fused.reshape(B * Ho, Wo, FUSED_PAD)
    nms_in = jnp.transpose(plane[:, :, HID:HID + n_hm], (2, 0, 1))
    nms_out = sigmoid_nms(nms_in)                              # (n_hm, Ho, Wo)
    hm_nms = nms_out[:NUM_CLASSES][None]                       # (1, 1, Ho, Wo)
    hm_hp_nms = nms_out[NUM_CLASSES:][None] if use_hm_hp else None

    dets = multi_pose_decode(hm_nms, wh, hps, reg, hm_hp_nms, hp_offset, K)
    return dets, feature_map


# --------------------------- CenterNet_3d forward ---------------------------
def centernet_3d_forward(x_nchw, params, opt):
    if opt.flip_test:
        raise NotImplementedError()
    start = time.time()
    w1, b1, w2, b2 = params
    # TODO(synk): with opt.mse_loss the PyTorch path feeds un-sigmoided hm_hp
    # to the decoder; only the (hm_hp=True, mse_loss=False) path is wired here.
    dets, feature_map = forward_core(
        x_nchw, w1, b1, w2, b2, K=opt.K,
        use_hm_hp=(opt.hm_hp and not opt.mse_loss),
        use_reg=opt.reg_offset, use_hp_off=opt.reg_hp_offset)
    dets, feature_map = jax.block_until_ready((dets, feature_map))
    forward_time = time.time()
    dets_np = np.asarray(dets).reshape(1, -1, dets.shape[2])
    decode_time = time.time()
    # TODO(synk): post_process applies an affine transform with `meta` (host
    # side, image-dependent); here we just package detections per class.
    results = {1: dets_np[0, :, :4 + 1 + 2 * NUM_JOINTS]}
    end = time.time()
    return {
        "results": results,
        "tot": end - start, "load": 0.0, "pre": 0.0,
        "net": forward_time - start, "dec": decode_time - forward_time,
        "post": end - decode_time, "merge": 0.0,
        "feature_map": feature_map,
    }


# ---------------------- synthetic CenterNet "model" -------------------------
def make_params(key):
    k1, k2 = jax.random.split(key)
    w1 = jax.random.normal(k1, (CIN, HID), jnp.float32) * 0.05
    b1 = jnp.zeros((1, HID), jnp.float32)
    # NOTE: head columns follow HEAD_ORDER = [hm | hm_hp | wh | hps | reg |
    # hp_offset]; real checkpoints would permute their 1x1-conv output
    # channels into this order at load time (zero runtime cost).
    w2 = jax.random.normal(k2, (HID, COUT), jnp.float32) * 0.05
    b2 = np.zeros((1, COUT), np.float32)
    b2[0, HEAD_OFF["hm"]:HEAD_OFF["hm"] + NUM_CLASSES] = -2.19       # hm bias
    b2[0, HEAD_OFF["hm_hp"]:HEAD_OFF["hm_hp"] + NUM_JOINTS] = -2.19  # hm_hp bias
    return w1, b1, w2, jnp.asarray(b2)


# ----------------------------------- main ------------------------------------
if __name__ == "__main__":
    key = jax.random.PRNGKey(0)
    kx, kp = jax.random.split(key)
    # small image: B=1 (decode path assumes batch 1), 3x128x128 -> 32x32 maps
    # (M = 1024 head rows -> 2-step parallel grid; 18-channel NMS grid).
    x = jax.random.normal(kx, (1, 3, 128, 128), jnp.float32)
    params = make_params(kp)
    opt = Opt()

    out = centernet_3d_forward(x, params, opt)
    jax.block_until_ready(out["feature_map"])
    res = out["results"][1]
    assert res.shape == (opt.K, 4 + 1 + 2 * NUM_JOINTS)
    assert np.isfinite(res).all()
    assert out["feature_map"].shape == (1, HID, 32, 32)
    print("KERNEL_OK")
</pallas_src>

<mosaic_0001>
module attributes {stable_mosaic.version = 11 : i64} {
  func.func @head_kernel(%arg0: i32, %arg1: memref<512x48xbf16, #tpu.memory_space<vmem>>, %arg2: memref<48x64xbf16, #tpu.memory_space<vmem>>, %arg3: memref<1x64xf32, #tpu.memory_space<vmem>>, %arg4: memref<64x58xbf16, #tpu.memory_space<vmem>>, %arg5: memref<1x58xf32, #tpu.memory_space<vmem>>, %arg6: memref<512x128xf32, #tpu.memory_space<vmem>>) attributes {dimension_semantics = [#tpu.dimension_semantics<parallel>], iteration_bounds = array<i64: 2>, scalar_prefetch = 0 : i64, scratch_operands = 0 : i64, tpu.core_type = #tpu.core_type<tc>, window_params = [{transform_indices = @transform_0, window_bounds = array<i64: 512, 48>}, {pipeline_mode = #tpu.pipeline_mode<synchronous>, transform_indices = @transform_1, window_bounds = array<i64: 48, 64>}, {pipeline_mode = #tpu.pipeline_mode<synchronous>, transform_indices = @transform_2, window_bounds = array<i64: 1, 64>}, {pipeline_mode = #tpu.pipeline_mode<synchronous>, transform_indices = @transform_3, window_bounds = array<i64: 64, 58>}, {pipeline_mode = #tpu.pipeline_mode<synchronous>, transform_indices = @transform_4, window_bounds = array<i64: 1, 58>}, {transform_indices = @transform_5, window_bounds = array<i64: 512, 128>}]} {
    %c0 = arith.constant 0 : index
    %c0_0 = arith.constant 0 : index
    %0 = vector.load %arg1[%c0, %c0_0] : memref<512x48xbf16, #tpu.memory_space<vmem>>, vector<512x48xbf16>
    %c0_1 = arith.constant 0 : index
    %c0_2 = arith.constant 0 : index
    %1 = vector.load %arg2[%c0_1, %c0_2] : memref<48x64xbf16, #tpu.memory_space<vmem>>, vector<48x64xbf16>
    %cst = arith.constant dense<0.000000e+00> : vector<512x64xf32>
    %2 = tpu.matmul %0, %1, %cst {dimension_numbers = #tpu.dot_dimension_numbers<[1], [0], [0], [1], [0, 0, 1, 1], [], []>} : vector<512x48xbf16>, vector<48x64xbf16>, vector<512x64xf32> -> vector<512x64xf32>
    %c0_3 = arith.constant 0 : index
    %c0_4 = arith.constant 0 : index
    %3 = vector.load %arg3[%c0_3, %c0_4] : memref<1x64xf32, #tpu.memory_space<vmem>>, vector<1x64xf32>
    %4 = vector.broadcast %3 : vector<1x64xf32> to vector<512x64xf32>
    %5 = arith.addf %2, %4 : vector<512x64xf32>
    %cst_5 = arith.constant 0.000000e+00 : f32
    %6 = vector.broadcast %cst_5 : f32 to vector<512x64xf32>
    %7 = arith.maximumf %5, %6 : vector<512x64xf32>
    %8 = arith.truncf %7 : vector<512x64xf32> to vector<512x64xbf16>
    %c0_6 = arith.constant 0 : index
    %c0_7 = arith.constant 0 : index
    %9 = vector.load %arg4[%c0_6, %c0_7] : memref<64x58xbf16, #tpu.memory_space<vmem>>, vector<64x58xbf16>
    %cst_8 = arith.constant dense<0.000000e+00> : vector<512x58xf32>
    %10 = tpu.matmul %8, %9, %cst_8 {dimension_numbers = #tpu.dot_dimension_numbers<[1], [0], [0], [1], [0, 0, 1, 1], [], []>} : vector<512x64xbf16>, vector<64x58xbf16>, vector<512x58xf32> -> vector<512x58xf32>
    %c0_9 = arith.constant 0 : index
    %c0_10 = arith.constant 0 : index
    %11 = vector.load %arg5[%c0_9, %c0_10] : memref<1x58xf32, #tpu.memory_space<vmem>>, vector<1x58xf32>
    %12 = vector.broadcast %11 : vector<1x58xf32> to vector<512x58xf32>
    %13 = arith.addf %10, %12 : vector<512x58xf32>
    %c0_11 = arith.constant 0 : index
    %c0_12 = arith.constant 0 : index
    %14 = vector.load %arg6[%c0_11, %c0_12] : memref<512x128xf32, #tpu.memory_space<vmem>>, vector<512x64xf32>
    tpu.vector_store %arg6[%c0_11, %c0_12], %7 {strides = array<i32>} : memref<512x128xf32, #tpu.memory_space<vmem>>, vector<512x64xf32>,
    %c0_13 = arith.constant 0 : index
    %c64 = arith.constant 64 : index
    %15 = vector.load %arg6[%c0_13, %c64] : memref<512x128xf32, #tpu.memory_space<vmem>>, vector<512x58xf32>
    tpu.vector_store %arg6[%c0_13, %c64], %13 {strides = array<i32>} : memref<512x128xf32, #tpu.memory_space<vmem>>, vector<512x58xf32>,
    return
  }
  func.func @transform_0(%arg0: i32) -> (i32, i32) {
    %c0_i32 = arith.constant 0 : i32
    %c0_i32_0 = arith.constant 0 : i32
    return %arg0, %c0_i32 : i32, i32
  }
  func.func @transform_1(%arg0: i32) -> (i32, i32) {
    %c0_i32 = arith.constant 0 : i32
    %c0_i32_0 = arith.constant 0 : i32
    %c0_i32_1 = arith.constant 0 : i32
    return %c0_i32, %c0_i32_0 : i32, i32
  }
  func.func @transform_2(%arg0: i32) -> (i32, i32) {
    %c0_i32 = arith.constant 0 : i32
    %c0_i32_0 = arith.constant 0 : i32
    %c0_i32_1 = arith.constant 0 : i32
    return %c0_i32, %c0_i32_0 : i32, i32
  }
  func.func @transform_3(%arg0: i32) -> (i32, i32) {
    %c0_i32 = arith.constant 0 : i32
    %c0_i32_0 = arith.constant 0 : i32
    %c0_i32_1 = arith.constant 0 : i32
    return %c0_i32, %c0_i32_0 : i32, i32
  }
  func.func @transform_4(%arg0: i32) -> (i32, i32) {
    %c0_i32 = arith.constant 0 : i32
    %c0_i32_0 = arith.constant 0 : i32
    %c0_i32_1 = arith.constant 0 : i32
    return %c0_i32, %c0_i32_0 : i32, i32
  }
  func.func @transform_5(%arg0: i32) -> (i32, i32) {
    %c0_i32 = arith.constant 0 : i32
    %c0_i32_0 = arith.constant 0 : i32
    return %arg0, %c0_i32 : i32, i32
  }
}

module attributes {stable_mosaic.version = 11 : i64} {
  func.func @nms_kernel(%arg0: i32, %arg1: memref<1x32x32xf32, #tpu.memory_space<vmem>>, %arg2: memref<1x32x32xf32, #tpu.memory_space<vmem>>) attributes {dimension_semantics = [#tpu.dimension_semantics<parallel>], iteration_bounds = array<i64: 18>, scalar_prefetch = 0 : i64, scratch_operands = 0 : i64, tpu.core_type = #tpu.core_type<tc>, window_params = [{transform_indices = @transform_0, window_bounds = array<i64: 1, 32, 32>}, {transform_indices = @transform_1, window_bounds = array<i64: 1, 32, 32>}]} {
    %c0 = arith.constant 0 : index
    %c0_0 = arith.constant 0 : index
    %c0_1 = arith.constant 0 : index
    %0 = vector.load %arg1[%c0, %c0_0, %c0_1] : memref<1x32x32xf32, #tpu.memory_space<vmem>>, vector<1x32x32xf32>
    %1 = arith.negf %0 : vector<1x32x32xf32>
    %2 = math.exp %1 : vector<1x32x32xf32>
    %cst = arith.constant 1.000000e+00 : f32
    %3 = vector.broadcast %cst : f32 to vector<1x32x32xf32>
    %4 = arith.addf %3, %2 : vector<1x32x32xf32>
    %5 = arith.divf %3, %4 : vector<1x32x32xf32>
    %6 = tpu.iota {dimensions = array<i32: 2>} : vector<1x32x32xi32>
    %7 = tpu.iota {dimensions = array<i32: 1>} : vector<1x32x32xi32>
    %c1_i32 = arith.constant 1 : i32
    %8 = vector.broadcast %c1_i32 : i32 to vector<1x32x32xi32>
    %9 = arith.cmpi sge, %6, %8 : vector<1x32x32xi32>
    %c1_i32_2 = arith.constant 1 : i32
    %10 = tpu.dynamic_rotate %5 by %c1_i32_2 dim 2 : vector<1x32x32xf32>, i32 -> vector<1x32x32xf32>
    %cst_3 = arith.constant -1.000000e+00 : f32
    %11 = vector.broadcast %cst_3 : f32 to vector<1x32x32xf32>
    %12 = arith.select %9, %10, %11 : vector<1x32x32xi1>, vector<1x32x32xf32>
    %c30_i32 = arith.constant 30 : i32
    %13 = vector.broadcast %c30_i32 : i32 to vector<1x32x32xi32>
    %14 = arith.cmpi sle, %6, %13 : vector<1x32x32xi32>
    %c31_i32 = arith.constant 31 : i32
    %15 = tpu.dynamic_rotate %5 by %c31_i32 dim 2 : vector<1x32x32xf32>, i32 -> vector<1x32x32xf32>
    %cst_4 = arith.constant -1.000000e+00 : f32
    %16 = vector.broadcast %cst_4 : f32 to vector<1x32x32xf32>
    %17 = arith.select %14, %15, %16 : vector<1x32x32xi1>, vector<1x32x32xf32>
    %18 = arith.maximumf %12, %17 : vector<1x32x32xf32>
    %19 = arith.maximumf %5, %18 : vector<1x32x32xf32>
    %c1_i32_5 = arith.constant 1 : i32
    %20 = vector.broadcast %c1_i32_5 : i32 to vector<1x32x32xi32>
    %21 = arith.cmpi sge, %7, %20 : vector<1x32x32xi32>
    %c1_i32_6 = arith.constant 1 : i32
    %22 = tpu.dynamic_rotate %19 by %c1_i32_6 dim 1 : vector<1x32x32xf32>, i32 -> vector<1x32x32xf32>
    %cst_7 = arith.constant -1.000000e+00 : f32
    %23 = vector.broadcast %cst_7 : f32 to vector<1x32x32xf32>
    %24 = arith.select %21, %22, %23 : vector<1x32x32xi1>, vector<1x32x32xf32>
    %c30_i32_8 = arith.constant 30 : i32
    %25 = vector.broadcast %c30_i32_8 : i32 to vector<1x32x32xi32>
    %26 = arith.cmpi sle, %7, %25 : vector<1x32x32xi32>
    %c31_i32_9 = arith.constant 31 : i32
    %27 = tpu.dynamic_rotate %19 by %c31_i32_9 dim 1 : vector<1x32x32xf32>, i32 -> vector<1x32x32xf32>
    %cst_10 = arith.constant -1.000000e+00 : f32
    %28 = vector.broadcast %cst_10 : f32 to vector<1x32x32xf32>
    %29 = arith.select %26, %27, %28 : vector<1x32x32xi1>, vector<1x32x32xf32>
    %30 = arith.maximumf %24, %29 : vector<1x32x32xf32>
    %31 = arith.maximumf %19, %30 : vector<1x32x32xf32>
    %32 = arith.cmpf oeq, %31, %5 : vector<1x32x32xf32>
    %33 = arith.extui %32 : vector<1x32x32xi1> to vector<1x32x32xi32>
    %34 = arith.sitofp %33 : vector<1x32x32xi32> to vector<1x32x32xf32>
    %35 = arith.mulf %5, %34 : vector<1x32x32xf32>
    %c0_11 = arith.constant 0 : index
    %c0_12 = arith.constant 0 : index
    %c0_13 = arith.constant 0 : index
    %36 = vector.load %arg2[%c0_11, %c0_12, %c0_13] : memref<1x32x32xf32, #tpu.memory_space<vmem>>, vector<1x32x32xf32>
    tpu.vector_store %arg2[%c0_11, %c0_12, %c0_13], %35 {strides = array<i32>} : memref<1x32x32xf32, #tpu.memory_space<vmem>>, vector<1x32x32xf32>,
    return
  }
  func.func @transform_0(%arg0: i32) -> (i32, i32, i32) {
    %c0_i32 = arith.constant 0 : i32
    %c0_i32_0 = arith.constant 0 : i32
    %c0_i32_1 = arith.constant 0 : i32
    return %arg0, %c0_i32, %c0_i32_0 : i32, i32, i32
  }
  func.func @transform_1(%arg0: i32) -> (i32, i32, i32) {
    %c0_i32 = arith.constant 0 : i32
    %c0_i32_0 = arith.constant 0 : i32
    %c0_i32_1 = arith.constant 0 : i32
    return %arg0, %c0_i32, %c0_i32_0 : i32, i32, i32
  }
}

</mosaic_0001>

<llo_original>
// kernel: forward_core.2
$region0: #{forward_core.2}
  #allocation0 [shape = 'u32[]', space=smem, size = 0x4, offset = 0x4, fixed_abs, tag = 'smem constant byte address 0x4 - core index']
  #allocation1 [shape = 'u32[144,128]{1,0:T(1,128)}', space=vmem, size = 0x12000, scoped, tag = 'internal scratch']
  %s0 = inlined_call_operand.vmem [shape: bf16[1024,48], index: 0, kind: input, shape index: {}]
  %s1 = inlined_call_operand.vmem [shape: bf16[48,64], index: 1, kind: input, shape index: {}]
  %s2 = inlined_call_operand.vmem [shape: f32[1,64], index: 2, kind: input, shape index: {}]
  %s3 = inlined_call_operand.vmem [shape: bf16[64,58], index: 3, kind: input, shape index: {}]
  %s4 = inlined_call_operand.vmem [shape: f32[1,58], index: 4, kind: input, shape index: {}]
  %s5 = inlined_call_operand.vmem [shape: f32[1024,128], index: 5, kind: output, shape index: {}]
  %s6 = sld [smem:[#allocation0]]
  $region53: #{forward_core.2} parent=0
    _
  %s8 = ssub.s32 1, %s6
  %s9 = scalar_select 0, %s8, %s6
  loop: start=0, step=1, limit=4
  $region2: #{forward_core.2} parent=0 // loop_pre_header
    _
  $region3: #{forward_core.2} parent=0 // loop_header
    %s11 = sphi 0, %s15
    %p12 = scmp.ge.s32.totalorder %s11, 4
    %s21 = sphi 0, %s23
    %s24 = sphi 0, %s21
    %s25 = sphi 0, %s24
    %s41 = sphi 0, %s25
    %s45 = sphi 0, %s45
    %s47 = sphi 0, %s45
    %s48 = sphi 0, %s47
    %s62 = sphi 0, %s48
    %s66 = sphi 0, %s66
    %s68 = sphi 0, %s66
    %s69 = sphi 0, %s68
    %s83 = sphi 0, %s69
    %s87 = sphi 0, %s87
    %s89 = sphi 0, %s87
    %s90 = sphi 0, %s89
    %s104 = sphi 0, %s90
    %s108 = sphi 0, %s108
    %s110 = sphi 0, %s108
    %s111 = sphi 0, %s110
    %s125 = sphi 0, %s111
    %s131 = sphi 0, %s133
    %s134 = sphi 0, %s131
    %s135 = sphi 0, %s134
    %s151 = sphi 0, %s135
  $region4: #{forward_core.2} parent=0 // loop_header_branch
    %14 = sbr.rel (%p12) target = $region8
  $region5: #{forward_core.2} parent=0 // loop_body
    %s16 = ssub.s32 %s11, 1
    %s17 = ssub.s32 %s11, 2
    %s18 = sadd.s32 %s11, 1
    %s19 = ssub.s32 %s11, %s18
    %p20 = scmp.eq.s32.totalorder %s19, 0
    %s22 = sadd.s32 %s21, 1
    %s23 = scalar_select %p20, %s21, %s22
    %p26 = pneg %p20
    %p27 = scmp.eq.s32.totalorder %s11, 1
    %p28 = por %p26, %p27
    %p29 = scmp.ne.s32.totalorder %s21, %s24
    %p30 = scmp.eq.s32.totalorder %s11, 0
    %p31 = por %p29, %p30
    %p32 = scmp.ne.s32.totalorder %s21, %s24
    %p33 = scmp.eq.s32.totalorder %s16, 1
    %p34 = por %p32, %p33
    %p35 = scmp.ne.s32.totalorder %s24, %s25
    %p36 = scmp.eq.s32.totalorder %s16, 0
    %p37 = por %p35, %p36
    %p38 = scmp.ne.s32.totalorder %s24, %s25
    %p39 = scmp.eq.s32.totalorder %s17, 1
    %p40 = por %p38, %p39
    %p42 = scmp.ne.s32.totalorder %s25, %s41
    %p43 = scmp.eq.s32.totalorder %s17, 0
    %p44 = por %p42, %p43
    %s46 = sadd.s32 %s45, 1
    %p49 = scmp.eq.s32.totalorder %s11, 1
    %p50 = scmp.ne.s32.totalorder %s45, %s47
    %p51 = scmp.eq.s32.totalorder %s11, 0
    %p52 = por %p50, %p51
    %p53 = scmp.ne.s32.totalorder %s45, %s47
    %p54 = scmp.eq.s32.totalorder %s16, 1
    %p55 = por %p53, %p54
    %p56 = scmp.ne.s32.totalorder %s47, %s48
    %p57 = scmp.eq.s32.totalorder %s16, 0
    %p58 = por %p56, %p57
    %p59 = scmp.ne.s32.totalorder %s47, %s48
    %p60 = scmp.eq.s32.totalorder %s17, 1
    %p61 = por %p59, %p60
    %p63 = scmp.ne.s32.totalorder %s48, %s62
    %p64 = scmp.eq.s32.totalorder %s17, 0
    %p65 = por %p63, %p64
    %s67 = sadd.s32 %s66, 1
    %p70 = scmp.eq.s32.totalorder %s11, 1
    %p71 = scmp.ne.s32.totalorder %s66, %s68
    %p72 = scmp.eq.s32.totalorder %s11, 0
    %p73 = por %p71, %p72
    %p74 = scmp.ne.s32.totalorder %s66, %s68
    %p75 = scmp.eq.s32.totalorder %s16, 1
    %p76 = por %p74, %p75
    %p77 = scmp.ne.s32.totalorder %s68, %s69
    %p78 = scmp.eq.s32.totalorder %s16, 0
    %p79 = por %p77, %p78
    %p80 = scmp.ne.s32.totalorder %s68, %s69
    %p81 = scmp.eq.s32.totalorder %s17, 1
    %p82 = por %p80, %p81
    %p84 = scmp.ne.s32.totalorder %s69, %s83
    %p85 = scmp.eq.s32.totalorder %s17, 0
    %p86 = por %p84, %p85
    %s88 = sadd.s32 %s87, 1
    %p91 = scmp.eq.s32.totalorder %s11, 1
    %p92 = scmp.ne.s32.totalorder %s87, %s89
    %p93 = scmp.eq.s32.totalorder %s11, 0
    %p94 = por %p92, %p93
    %p95 = scmp.ne.s32.totalorder %s87, %s89
    %p96 = scmp.eq.s32.totalorder %s16, 1
    %p97 = por %p95, %p96
    %p98 = scmp.ne.s32.totalorder %s89, %s90
    %p99 = scmp.eq.s32.totalorder %s16, 0
    %p100 = por %p98, %p99
    %p101 = scmp.ne.s32.totalorder %s89, %s90
    %p102 = scmp.eq.s32.totalorder %s17, 1
    %p103 = por %p101, %p102
    %p105 = scmp.ne.s32.totalorder %s90, %s104
    %p106 = scmp.eq.s32.totalorder %s17, 0
    %p107 = por %p105, %p106
    %s109 = sadd.s32 %s108, 1
    %p112 = scmp.eq.s32.totalorder %s11, 1
    %p113 = scmp.ne.s32.totalorder %s108, %s110
    %p114 = scmp.eq.s32.totalorder %s11, 0
    %p115 = por %p113, %p114
    %p116 = scmp.ne.s32.totalorder %s108, %s110
    %p117 = scmp.eq.s32.totalorder %s16, 1
    %p118 = por %p116, %p117
    %p119 = scmp.ne.s32.totalorder %s110, %s111
    %p120 = scmp.eq.s32.totalorder %s16, 0
    %p121 = por %p119, %p120
    %p122 = scmp.ne.s32.totalorder %s110, %s111
    %p123 = scmp.eq.s32.totalorder %s17, 1
    %p124 = por %p122, %p123
    %p126 = scmp.ne.s32.totalorder %s111, %s125
    %p127 = scmp.eq.s32.totalorder %s17, 0
    %p128 = por %p126, %p127
    %s129 = ssub.s32 %s11, %s18
    %p130 = scmp.eq.s32.totalorder %s129, 0
    %s132 = sadd.s32 %s131, 1
    %s133 = scalar_select %p130, %s131, %s132
    %p136 = pneg %p130
    %p137 = scmp.eq.s32.totalorder %s11, 1
    %p138 = por %p136, %p137
    %p139 = scmp.ne.s32.totalorder %s131, %s134
    %p140 = scmp.eq.s32.totalorder %s11, 0
    %p141 = por %p139, %p140
    %p142 = scmp.ne.s32.totalorder %s131, %s134
    %p143 = scmp.eq.s32.totalorder %s16, 1
    %p144 = por %p142, %p143
    %p145 = scmp.ne.s32.totalorder %s134, %s135
    %p146 = scmp.eq.s32.totalorder %s16, 0
    %p147 = por %p145, %p146
    %p148 = scmp.ne.s32.totalorder %s134, %s135
    %p149 = scmp.eq.s32.totalorder %s17, 1
    %p150 = por %p148, %p149
    %p152 = scmp.ne.s32.totalorder %s135, %s151
    %p153 = scmp.eq.s32.totalorder %s17, 0
    %p154 = por %p152, %p153
    %p155 = scmp.le.s32.totalorder 1, %s11
    %p156 = scmp.lt.s32.totalorder %s11, 3
    %p157 = pnand %p155, %p156
    %p158 = pneg %p157
    // Predicated region
    $region9: #{forward_core.2} parent=5 // pred_check
      _
    $region10: #{forward_core.2} parent=5 // pred_check_branch
      %160 = sbr.rel (%p157) target = $region12
    $region11: #{forward_core.2} parent=5 // pred_region
      %s161 = ssub.s32 %s11, 1
      // Predicated region
      $region13: #{forward_core.2} parent=11 // pred_check
        %p162 = pneg %p58
      $region14: #{forward_core.2} parent=11 // pred_check_branch
        %164 = sbr.rel (%p162) target = $region16
      $region15: #{forward_core.2} parent=11 // pred_region
        _
      $region16: #{forward_core.2} parent=11 // pred_fallthru
        _
      // Predicated region
      $region17: #{forward_core.2} parent=11 // pred_check
        %p165 = pneg %p79
      $region18: #{forward_core.2} parent=11 // pred_check_branch
        %167 = sbr.rel (%p165) target = $region20
      $region19: #{forward_core.2} parent=11 // pred_region
        _
      $region20: #{forward_core.2} parent=11 // pred_fallthru
        _
      // Predicated region
      $region21: #{forward_core.2} parent=11 // pred_check
        %p168 = pneg %p100
      $region22: #{forward_core.2} parent=11 // pred_check_branch
        %170 = sbr.rel (%p168) target = $region24
      $region23: #{forward_core.2} parent=11 // pred_region
        _
      $region24: #{forward_core.2} parent=11 // pred_fallthru
        _
      // Predicated region
      $region25: #{forward_core.2} parent=11 // pred_check
        %p171 = pneg %p121
      $region26: #{forward_core.2} parent=11 // pred_check_branch
        %173 = sbr.rel (%p171) target = $region28
      $region27: #{forward_core.2} parent=11 // pred_region
        _
      $region28: #{forward_core.2} parent=11 // pred_fallthru
        _
    $region12: #{forward_core.2} parent=5 // pred_fallthru
      _
    %p174 = scmp.lt.s32.totalorder %s11, 2
    // Predicated region
    $region29: #{forward_core.2} parent=5 // pred_check
      %p175 = pneg %p174
    $region30: #{forward_core.2} parent=5 // pred_check_branch
      %177 = sbr.rel (%p175) target = $region32
    $region31: #{forward_core.2} parent=5 // pred_region
      // Predicated region
      $region33: #{forward_core.2} parent=31 // pred_check
        %p178 = pneg %p31
      $region34: #{forward_core.2} parent=31 // pred_check_branch
        %180 = sbr.rel (%p178) target = $region36
      $region35: #{forward_core.2} parent=31 // pred_region
        %s181 = smul.u32 64, %s11
        %p182 = scmp.lt.s32.totalorder %s181, 127
        %s183 = scalar_select %p182, %s181, 127
        %s184 = smul.addr %s183, 4
        %s185 = scalar_lea.vmem %s0, %s184
        %s186 = smul.u32 64, %s11
      $region36: #{forward_core.2} parent=31 // pred_fallthru
        _
    $region32: #{forward_core.2} parent=5 // pred_fallthru
      _
    %p187 = scmp.le.s32.totalorder 1, %s11
    %p188 = scmp.lt.s32.totalorder %s11, 3
    %p189 = pnand %p187, %p188
    %p190 = pneg %p189
    // Predicated region
    $region37: #{forward_core.2} parent=5 // pred_check
      _
    $region38: #{forward_core.2} parent=5 // pred_check_branch
      %192 = sbr.rel (%p189) target = $region40
    $region39: #{forward_core.2} parent=5 // pred_region
      %s193 = ssub.s32 %s11, 1
      %s194 = smul.u32 64, %s16
      %p195 = scmp.lt.s32.totalorder %s194, 127
      %s196 = scalar_select %p195, %s194, 127
      %s197 = smul.addr %s196, 4
      %s198 = scalar_lea.vmem %s0, %s197
      %p199 = pneg %p37
      %p200 = pneg %p34
      %p201 = pneg %p58
      %p202 = pneg %p55
      %p203 = pneg %p79
      %p204 = pneg %p76
      %p205 = pneg %p100
      %p206 = pneg %p97
      %p207 = pneg %p121
      %p208 = pneg %p118
      %p209 = pneg %p147
      %p210 = pneg %p144
      %s211 = smul.u32 64, %s16
      %p212 = scmp.lt.s32.totalorder %s211, 127
      %s213 = scalar_select %p212, %s211, 127
      %s214 = smul.addr %s213, 8
      %s215 = scalar_lea.vmem %s5, %s214
      %s216 = smul.u32 64, %s16
      %p217 = scmp.lt.s32.totalorder %s216, 127
      %s218 = scalar_select %p217, %s216, 127
      %s219 = smul.addr %s218, 4
      %s220 = scalar_lea.vmem %s0, %s219
      %s221 = smul.u32 64, %s16
      %s222 = smul.u32 64, %s16
      %p223 = scmp.lt.s32.totalorder %s222, 127
      %s224 = scalar_select %p223, %s222, 127
      %s225 = smul.addr %s224, 8
      %s226 = scalar_lea.vmem %s5, %s225
      %s227 = smul.u32 64, %s16
      %v229 = vld [vmem:[%s220] sm:$0xf]
      %v230 = vld [vmem:[%s220 + $0x4] sm:$0xf]
      %v231 = vld [vmem:[%s220 + $0x8] sm:$0xf]
      %v232 = vld [vmem:[%s220 + $0xc] sm:$0xf]
      %v233 = vld [vmem:[%s220 + $0x10] sm:$0xf]
      %v234 = vld [vmem:[%s220 + $0x14] sm:$0xf]
      %v235 = vld [vmem:[%s220 + $0x18] sm:$0xf]
      %v236 = vld [vmem:[%s220 + $0x1c] sm:$0xf]
      %v237 = vld [vmem:[%s220 + $0x20] sm:$0xf]
      %v238 = vld [vmem:[%s220 + $0x24] sm:$0xf]
      %v239 = vld [vmem:[%s220 + $0x28] sm:$0xf]
      %v240 = vld [vmem:[%s220 + $0x2c] sm:$0xf]
      %v241 = vld [vmem:[%s220 + $0x30] sm:$0xf]
      %v242 = vld [vmem:[%s220 + $0x34] sm:$0xf]
      %v243 = vld [vmem:[%s220 + $0x38] sm:$0xf]
      %v244 = vld [vmem:[%s220 + $0x3c] sm:$0xf]
      %v245 = vld [vmem:[%s220 + $0x40] sm:$0xf]
      %v246 = vld [vmem:[%s220 + $0x44] sm:$0xf]
      %v247 = vld [vmem:[%s220 + $0x48] sm:$0xf]
      %v248 = vld [vmem:[%s220 + $0x4c] sm:$0xf]
      %v249 = vld [vmem:[%s220 + $0x50] sm:$0xf]
      %v250 = vld [vmem:[%s220 + $0x54] sm:$0xf]
      %v251 = vld [vmem:[%s220 + $0x58] sm:$0xf]
      %v252 = vld [vmem:[%s220 + $0x5c] sm:$0xf]
      %v253 = vld [vmem:[%s220 + $0x60] sm:$0xf]
      %v254 = vld [vmem:[%s220 + $0x64] sm:$0xf]
      %v255 = vld [vmem:[%s220 + $0x68] sm:$0xf]
      %v256 = vld [vmem:[%s220 + $0x6c] sm:$0xf]
      %v257 = vld [vmem:[%s220 + $0x70] sm:$0xf]
      %v258 = vld [vmem:[%s220 + $0x74] sm:$0xf]
      %v259 = vld [vmem:[%s220 + $0x78] sm:$0xf]
      %v260 = vld [vmem:[%s220 + $0x7c] sm:$0xf]
      %v261 = vld [vmem:[%s220 + $0x80] sm:$0xf]
      %v262 = vld [vmem:[%s220 + $0x84] sm:$0xf]
      %v263 = vld [vmem:[%s220 + $0x88] sm:$0xf]
      %v264 = vld [vmem:[%s220 + $0x8c] sm:$0xf]
      %v265 = vld [vmem:[%s220 + $0x90] sm:$0xf]
      %v266 = vld [vmem:[%s220 + $0x94] sm:$0xf]
      %v267 = vld [vmem:[%s220 + $0x98] sm:$0xf]
      %v268 = vld [vmem:[%s220 + $0x9c] sm:$0xf]
      %v269 = vld [vmem:[%s220 + $0xa0] sm:$0xf]
      %v270 = vld [vmem:[%s220 + $0xa4] sm:$0xf]
      %v271 = vld [vmem:[%s220 + $0xa8] sm:$0xf]
      %v272 = vld [vmem:[%s220 + $0xac] sm:$0xf]
      %v273 = vld [vmem:[%s220 + $0xb0] sm:$0xf]
      %v274 = vld [vmem:[%s220 + $0xb4] sm:$0xf]
      %v275 = vld [vmem:[%s220 + $0xb8] sm:$0xf]
      %v276 = vld [vmem:[%s220 + $0xbc] sm:$0xf]
      %v277 = vld [vmem:[%s220 + $0xc0] sm:$0xf]
      %v278 = vld [vmem:[%s220 + $0xc4] sm:$0xf]
      %v279 = vld [vmem:[%s220 + $0xc8] sm:$0xf]
      %v280 = vld [vmem:[%s220 + $0xcc] sm:$0xf]
      %v281 = vld [vmem:[%s220 + $0xd0] sm:$0xf]
      %v282 = vld [vmem:[%s220 + $0xd4] sm:$0xf]
      %v283 = vld [vmem:[%s220 + $0xd8] sm:$0xf]
      %v284 = vld [vmem:[%s220 + $0xdc] sm:$0xf]
      %v285 = vld [vmem:[%s220 + $0xe0] sm:$0xf]
      %v286 = vld [vmem:[%s220 + $0xe4] sm:$0xf]
      %v287 = vld [vmem:[%s220 + $0xe8] sm:$0xf]
      %v288 = vld [vmem:[%s220 + $0xec] sm:$0xf]
      %v289 = vld [vmem:[%s220 + $0xf0] sm:$0xf]
      %v290 = vld [vmem:[%s220 + $0xf4] sm:$0xf]
      %v291 = vld [vmem:[%s220 + $0xf8] sm:$0xf]
      %v292 = vld [vmem:[%s220 + $0xfc] sm:$0xf]
      %v293 = vld [vmem:[%s1] sm:$0xf]
      %v294 = vld [vmem:[%s1 + $0x4] sm:$0xf]
      %v295 = vld [vmem:[%s1 + $0x8] sm:$0xf]
      %v296 = vld [vmem:[%s1 + $0xc] sm:$0xf]
      %v297 = vld [vmem:[%s1 + $0x10] sm:$0xf]
      %v298 = vld [vmem:[%s1 + $0x14] sm:$0xf]
      %v299 = vld [vmem:[%s2] sm:$0x1]
      %v301 = vlaneseq
      %v302 = vshrl.u32 %v301, 7
      %v303 = vsub.s32 0, %v302
      %v304 = vrot.slane %v299, %v303
      %v370 = vunpack.c.l.b16 %v229
      %v371 = vunpack.c.l.b16 %v230
      %v372 = vunpack.c.l.b16 %v231
      %v373 = vunpack.c.l.b16 %v232
      %v374 = vunpack.c.l.b16 %v233
      %v375 = vunpack.c.l.b16 %v234
      %v376 = vunpack.c.l.b16 %v235
      %v377 = vunpack.c.l.b16 %v236
      %v378 = vunpack.c.l.b16 %v237
      %v379 = vunpack.c.l.b16 %v238
      %v380 = vunpack.c.l.b16 %v239
      %v381 = vunpack.c.l.b16 %v240
      %v382 = vunpack.c.l.b16 %v241
      %v383 = vunpack.c.l.b16 %v242
      %v384 = vunpack.c.l.b16 %v243
      %v385 = vunpack.c.l.b16 %v244
      %v386 = vunpack.c.l.b16 %v245
      %v387 = vunpack.c.l.b16 %v246
      %v388 = vunpack.c.l.b16 %v247
      %v389 = vunpack.c.l.b16 %v248
      %v390 = vunpack.c.l.b16 %v249
      %v391 = vunpack.c.l.b16 %v250
      %v392 = vunpack.c.l.b16 %v251
      %v393 = vunpack.c.l.b16 %v252
      %v394 = vunpack.c.l.b16 %v253
      %v395 = vunpack.c.l.b16 %v254
      %v396 = vunpack.c.l.b16 %v255
      %v397 = vunpack.c.l.b16 %v256
      %v398 = vunpack.c.l.b16 %v257
      %v399 = vunpack.c.l.b16 %v258
      %v400 = vunpack.c.l.b16 %v259
      %v401 = vunpack.c.l.b16 %v260
      %v402 = vunpack.c.l.b16 %v261
      %v403 = vunpack.c.l.b16 %v262
      %v404 = vunpack.c.l.b16 %v263
      %v405 = vunpack.c.l.b16 %v264
      %v406 = vunpack.c.l.b16 %v265
      %v407 = vunpack.c.l.b16 %v266
      %v408 = vunpack.c.l.b16 %v267
      %v409 = vunpack.c.l.b16 %v268
      %v410 = vunpack.c.l.b16 %v269
      %v411 = vunpack.c.l.b16 %v270
      %v412 = vunpack.c.l.b16 %v271
      %v413 = vunpack.c.l.b16 %v272
      %v414 = vunpack.c.l.b16 %v273
      %v415 = vunpack.c.l.b16 %v274
      %v416 = vunpack.c.l.b16 %v275
      %v417 = vunpack.c.l.b16 %v276
      %v418 = vunpack.c.l.b16 %v277
      %v419 = vunpack.c.l.b16 %v278
      %v420 = vunpack.c.l.b16 %v279
      %v421 = vunpack.c.l.b16 %v280
      %v422 = vunpack.c.l.b16 %v281
      %v423 = vunpack.c.l.b16 %v282
      %v424 = vunpack.c.l.b16 %v283
      %v425 = vunpack.c.l.b16 %v284
      %v426 = vunpack.c.l.b16 %v285
      %v427 = vunpack.c.l.b16 %v286
      %v428 = vunpack.c.l.b16 %v287
      %v429 = vunpack.c.l.b16 %v288
      %v430 = vunpack.c.l.b16 %v289
      %v431 = vunpack.c.l.b16 %v290
      %v432 = vunpack.c.l.b16 %v291
      %v433 = vunpack.c.l.b16 %v292
      %v434 = vpack.c.b16 %v371, %v370
      %v435 = vpack.c.b16 %v373, %v372
      %v436 = vpack.c.b16 %v375, %v374
      %v437 = vpack.c.b16 %v377, %v376
      %v438 = vpack.c.b16 %v379, %v378
      %v439 = vpack.c.b16 %v381, %v380
      %v440 = vpack.c.b16 %v383, %v382
      %v441 = vpack.c.b16 %v385, %v384
      %v442 = vpack.c.b16 %v387, %v386
      %v443 = vpack.c.b16 %v389, %v388
      %v444 = vpack.c.b16 %v391, %v390
      %v445 = vpack.c.b16 %v393, %v392
      %v446 = vpack.c.b16 %v395, %v394
      %v447 = vpack.c.b16 %v397, %v396
      %v448 = vpack.c.b16 %v399, %v398
      %v449 = vpack.c.b16 %v401, %v400
      %v450 = vpack.c.b16 %v403, %v402
      %v451 = vpack.c.b16 %v405, %v404
      %v452 = vpack.c.b16 %v407, %v406
      %v453 = vpack.c.b16 %v409, %v408
      %v454 = vpack.c.b16 %v411, %v410
      %v455 = vpack.c.b16 %v413, %v412
      %v456 = vpack.c.b16 %v415, %v414
      %v457 = vpack.c.b16 %v417, %v416
      %v458 = vpack.c.b16 %v419, %v418
      %v459 = vpack.c.b16 %v421, %v420
      %v460 = vpack.c.b16 %v423, %v422
      %v461 = vpack.c.b16 %v425, %v424
      %v462 = vpack.c.b16 %v427, %v426
      %v463 = vpack.c.b16 %v429, %v428
      %v464 = vpack.c.b16 %v431, %v430
      %v465 = vpack.c.b16 %v433, %v432
      %v472 = vunpack.c.l.b16 %v293
      %v473 = vunpack.c.l.b16 %v294
      %v474 = vunpack.c.l.b16 %v295
      %v475 = vunpack.c.l.b16 %v296
      %v476 = vunpack.c.l.b16 %v297
      %v477 = vunpack.c.l.b16 %v298
      %v478 = vpack.c.b16 %v473, %v472
      %v479 = vpack.c.b16 %v475, %v474
      %v480 = vpack.c.b16 %v477, %v476
      %vm484 = vcmask 392192
      %v486 = vsel %vm484, %v434, 0
      %v489 = vsel %vm484, %v435, 0
      %v492 = vsel %vm484, %v436, 0
      %v495 = vsel %vm484, %v437, 0
      %v498 = vsel %vm484, %v438, 0
      %v501 = vsel %vm484, %v439, 0
      %v504 = vsel %vm484, %v440, 0
      %v507 = vsel %vm484, %v441, 0
      %v510 = vsel %vm484, %v442, 0
      %v513 = vsel %vm484, %v443, 0
      %v516 = vsel %vm484, %v444, 0
      %v519 = vsel %vm484, %v445, 0
      %v522 = vsel %vm484, %v446, 0
      %v525 = vsel %vm484, %v447, 0
      %v528 = vsel %vm484, %v448, 0
      %v531 = vsel %vm484, %v449, 0
      %v534 = vsel %vm484, %v450, 0
      %v537 = vsel %vm484, %v451, 0
      %v540 = vsel %vm484, %v452, 0
      %v543 = vsel %vm484, %v453, 0
      %v546 = vsel %vm484, %v454, 0
      %v549 = vsel %vm484, %v455, 0
      %v552 = vsel %vm484, %v456, 0
      %v555 = vsel %vm484, %v457, 0
      %v558 = vsel %vm484, %v458, 0
      %v561 = vsel %vm484, %v459, 0
      %v564 = vsel %vm484, %v460, 0
      %v567 = vsel %vm484, %v461, 0
      %v570 = vsel %vm484, %v462, 0
      %v573 = vsel %vm484, %v463, 0
      %v576 = vsel %vm484, %v464, 0
      %v579 = vsel %vm484, %v465, 0
      %581 = vmatprep.subr.bf16.mxu0 0
      %582 = vmatpush1.bf16.msra.mxu0 0
      %583 = vmatprep.subr.bf16.mxu0 0
      %584 = vmatpush1.bf16.msra.mxu0 0
      %585 = vmatprep.subr.bf16.mxu0 0
      %586 = vmatpush1.bf16.msra.mxu0 0
      %587 = vmatprep.subr.bf16.mxu0 0
      %588 = vmatpush1.bf16.msra.mxu0 0
      %589 = vmatprep.subr.bf16.mxu0 0
      %590 = vmatpush1.bf16.msra.mxu0 0
      %591 = vmatprep.subr.bf16.mxu0 0
      %592 = vmatpush1.bf16.msra.mxu0 %v480
      %593 = vmatprep.subr.bf16.mxu0 0
      %594 = vmatpush1.bf16.msra.mxu0 %v479
      %595 = vmatprep.subr.bf16.mxu0 0
      %596 = vmatpush1.bf16.msra.mxu0 %v478
      %597 = vmatprep.subr.bf16.mxu0 0
      %598 = vmatpush2.bf16.msra.mxu0 0
      %599 = vmatprep.subr.bf16.mxu0 0
      %600 = vmatpush2.bf16.msra.mxu0 0
      %601 = vmatprep.subr.bf16.mxu0 0
      %602 = vmatpush2.bf16.msra.mxu0 0
      %603 = vmatprep.subr.bf16.mxu0 0
      %604 = vmatpush2.bf16.msra.mxu0 0
      %605 = vmatprep.subr.bf16.mxu0 0
      %606 = vmatpush2.bf16.msra.mxu0 0
      %607 = vmatprep.subr.bf16.mxu0 0
      %608 = vmatpush2.bf16.msra.mxu0 0
      %609 = vmatprep.subr.bf16.mxu0 0
      %610 = vmatpush2.bf16.msra.mxu0 0
      %611 = vmatprep.subr.bf16.mxu0 0
      %612 = vmatpush2.bf16.msra.mxu0 0
      %613 = vmatprep.mubr.bf16.mxu0 0
      %614 = vmatmul.mubr.bf16.gmra.mxu0 %v486
      %v615 = vpop.f32.mrf.mxu0
      %v616 = vadd.f32 %v304, %v615
      %v617 = vpop.f32.mrf.mxu0
      %v618 = vpop.f32.mrf.mxu0
      %v619 = vadd.f32 %v304, %v618
      %v620 = vpop.f32.mrf.mxu0
      %621 = vmatprep.mubr.bf16.mxu0 0
      %622 = vmatmul.mubr.bf16.gmra.mxu0 %v489
      %v623 = vpop.f32.mrf.mxu0
      %v624 = vadd.f32 %v304, %v623
      %v625 = vpop.f32.mrf.mxu0
      %v626 = vpop.f32.mrf.mxu0
      %v627 = vadd.f32 %v304, %v626
      %v628 = vpop.f32.mrf.mxu0
      %629 = vmatprep.mubr.bf16.mxu0 0
      %630 = vmatmul.mubr.bf16.gmra.mxu0 %v492
      %v631 = vpop.f32.mrf.mxu0
      %v632 = vadd.f32 %v304, %v631
      %v633 = vpop.f32.mrf.mxu0
      %v634 = vpop.f32.mrf.mxu0
      %v635 = vadd.f32 %v304, %v634
      %v636 = vpop.f32.mrf.mxu0
      %637 = vmatprep.mubr.bf16.mxu0 0
      %638 = vmatmul.mubr.bf16.gmra.mxu0 %v495
      %v639 = vpop.f32.mrf.mxu0
      %v640 = vadd.f32 %v304, %v639
      %v641 = vpop.f32.mrf.mxu0
      %v642 = vpop.f32.mrf.mxu0
      %v643 = vadd.f32 %v304, %v642
      %v644 = vpop.f32.mrf.mxu0
      %645 = vmatprep.mubr.bf16.mxu0 0
      %646 = vmatmul.mubr.bf16.gmra.mxu0 %v498
      %v647 = vpop.f32.mrf.mxu0
      %v648 = vadd.f32 %v304, %v647
      %v649 = vpop.f32.mrf.mxu0
      %v650 = vpop.f32.mrf.mxu0
      %v651 = vadd.f32 %v304, %v650
      %v652 = vpop.f32.mrf.mxu0
      %653 = vmatprep.mubr.bf16.mxu0 0
      %654 = vmatmul.mubr.bf16.gmra.mxu0 %v501
      %v655 = vpop.f32.mrf.mxu0
      %v656 = vadd.f32 %v304, %v655
      %v657 = vpop.f32.mrf.mxu0
      %v658 = vpop.f32.mrf.mxu0
      %v659 = vadd.f32 %v304, %v658
      %v660 = vpop.f32.mrf.mxu0
      %661 = vmatprep.mubr.bf16.mxu0 0
      %662 = vmatmul.mubr.bf16.gmra.mxu0 %v504
      %v663 = vpop.f32.mrf.mxu0
      %v664 = vadd.f32 %v304, %v663
      %v665 = vpop.f32.mrf.mxu0
      %v666 = vpop.f32.mrf.mxu0
      %v667 = vadd.f32 %v304, %v666
      %v668 = vpop.f32.mrf.mxu0
      %669 = vmatprep.mubr.bf16.mxu0 0
      %670 = vmatmul.mubr.bf16.gmra.mxu0 %v507
      %v671 = vpop.f32.mrf.mxu0
      %v672 = vadd.f32 %v304, %v671
      %v673 = vpop.f32.mrf.mxu0
      %v674 = vpop.f32.mrf.mxu0
      %v675 = vadd.f32 %v304, %v674
      %v676 = vpop.f32.mrf.mxu0
      %677 = vmatprep.mubr.bf16.mxu0 0
      %678 = vmatmul.mubr.bf16.gmra.mxu0 %v510
      %v679 = vpop.f32.mrf.mxu0
      %v680 = vadd.f32 %v304, %v679
      %v681 = vpop.f32.mrf.mxu0
      %v682 = vpop.f32.mrf.mxu0
      %v683 = vadd.f32 %v304, %v682
      %v684 = vpop.f32.mrf.mxu0
      %685 = vmatprep.mubr.bf16.mxu0 0
      %686 = vmatmul.mubr.bf16.gmra.mxu0 %v513
      %v687 = vpop.f32.mrf.mxu0
      %v688 = vadd.f32 %v304, %v687
      %v689 = vpop.f32.mrf.mxu0
      %v690 = vpop.f32.mrf.mxu0
      %v691 = vadd.f32 %v304, %v690
      %v692 = vpop.f32.mrf.mxu0
      %693 = vmatprep.mubr.bf16.mxu0 0
      %694 = vmatmul.mubr.bf16.gmra.mxu0 %v516
      %v695 = vpop.f32.mrf.mxu0
      %v696 = vadd.f32 %v304, %v695
      %v697 = vpop.f32.mrf.mxu0
      %v698 = vpop.f32.mrf.mxu0
      %v699 = vadd.f32 %v304, %v698
      %v700 = vpop.f32.mrf.mxu0
      %701 = vmatprep.mubr.bf16.mxu0 0
      %702 = vmatmul.mubr.bf16.gmra.mxu0 %v519
      %v703 = vpop.f32.mrf.mxu0
      %v704 = vadd.f32 %v304, %v703
      %v705 = vpop.f32.mrf.mxu0
      %v706 = vpop.f32.mrf.mxu0
      %v707 = vadd.f32 %v304, %v706
      %v708 = vpop.f32.mrf.mxu0
      %709 = vmatprep.mubr.bf16.mxu0 0
      %710 = vmatmul.mubr.bf16.gmra.mxu0 %v522
      %v711 = vpop.f32.mrf.mxu0
      %v712 = vadd.f32 %v304, %v711
      %v713 = vpop.f32.mrf.mxu0
      %v714 = vpop.f32.mrf.mxu0
      %v715 = vadd.f32 %v304, %v714
      %v716 = vpop.f32.mrf.mxu0
      %717 = vmatprep.mubr.bf16.mxu0 0
      %718 = vmatmul.mubr.bf16.gmra.mxu0 %v525
      %v719 = vpop.f32.mrf.mxu0
      %v720 = vadd.f32 %v304, %v719
      %v721 = vpop.f32.mrf.mxu0
      %v722 = vpop.f32.mrf.mxu0
      %v723 = vadd.f32 %v304, %v722
      %v724 = vpop.f32.mrf.mxu0
      %725 = vmatprep.mubr.bf16.mxu0 0
      %726 = vmatmul.mubr.bf16.gmra.mxu0 %v528
      %v727 = vpop.f32.mrf.mxu0
      %v728 = vadd.f32 %v304, %v727
      %v729 = vpop.f32.mrf.mxu0
      %v730 = vpop.f32.mrf.mxu0
      %v731 = vadd.f32 %v304, %v730
      %v732 = vpop.f32.mrf.mxu0
      %733 = vmatprep.mubr.bf16.mxu0 0
      %734 = vmatmul.mubr.bf16.gmra.mxu0 %v531
      %v735 = vpop.f32.mrf.mxu0
      %v736 = vadd.f32 %v304, %v735
      %v737 = vpop.f32.mrf.mxu0
      %v738 = vpop.f32.mrf.mxu0
      %v739 = vadd.f32 %v304, %v738
      %v740 = vpop.f32.mrf.mxu0
      %741 = vmatprep.mubr.bf16.mxu0 0
      %742 = vmatmul.mubr.bf16.gmra.mxu0 %v534
      %v743 = vpop.f32.mrf.mxu0
      %v744 = vadd.f32 %v304, %v743
      %v745 = vpop.f32.mrf.mxu0
      %v746 = vpop.f32.mrf.mxu0
      %v747 = vadd.f32 %v304, %v746
      %v748 = vpop.f32.mrf.mxu0
      %749 = vmatprep.mubr.bf16.mxu0 0
      %750 = vmatmul.mubr.bf16.gmra.mxu0 %v537
      %v751 = vpop.f32.mrf.mxu0
      %v752 = vadd.f32 %v304, %v751
      %v753 = vpop.f32.mrf.mxu0
      %v754 = vpop.f32.mrf.mxu0
      %v755 = vadd.f32 %v304, %v754
      %v756 = vpop.f32.mrf.mxu0
      %757 = vmatprep.mubr.bf16.mxu0 0
      %758 = vmatmul.mubr.bf16.gmra.mxu0 %v540
      %v759 = vpop.f32.mrf.mxu0
      %v760 = vadd.f32 %v304, %v759
      %v761 = vpop.f32.mrf.mxu0
      %v762 = vpop.f32.mrf.mxu0
      %v763 = vadd.f32 %v304, %v762
      %v764 = vpop.f32.mrf.mxu0
      %765 = vmatprep.mubr.bf16.mxu0 0
      %766 = vmatmul.mubr.bf16.gmra.mxu0 %v543
      %v767 = vpop.f32.mrf.mxu0
      %v768 = vadd.f32 %v304, %v767
      %v769 = vpop.f32.mrf.mxu0
      %v770 = vpop.f32.mrf.mxu0
      %v771 = vadd.f32 %v304, %v770
      %v772 = vpop.f32.mrf.mxu0
      %773 = vmatprep.mubr.bf16.mxu0 0
      %774 = vmatmul.mubr.bf16.gmra.mxu0 %v546
      %v775 = vpop.f32.mrf.mxu0
      %v776 = vadd.f32 %v304, %v775
      %v777 = vpop.f32.mrf.mxu0
      %v778 = vpop.f32.mrf.mxu0
      %v779 = vadd.f32 %v304, %v778
      %v780 = vpop.f32.mrf.mxu0
      %781 = vmatprep.mubr.bf16.mxu0 0
      %782 = vmatmul.mubr.bf16.gmra.mxu0 %v549
      %v783 = vpop.f32.mrf.mxu0
      %v784 = vadd.f32 %v304, %v783
      %v785 = vpop.f32.mrf.mxu0
      %v786 = vpop.f32.mrf.mxu0
      %v787 = vadd.f32 %v304, %v786
      %v788 = vpop.f32.mrf.mxu0
      %789 = vmatprep.mubr.bf16.mxu0 0
      %790 = vmatmul.mubr.bf16.gmra.mxu0 %v552
      %v791 = vpop.f32.mrf.mxu0
      %v792 = vadd.f32 %v304, %v791
      %v793 = vpop.f32.mrf.mxu0
      %v794 = vpop.f32.mrf.mxu0
      %v795 = vadd.f32 %v304, %v794
      %v796 = vpop.f32.mrf.mxu0
      %797 = vmatprep.mubr.bf16.mxu0 0
      %798 = vmatmul.mubr.bf16.gmra.mxu0 %v555
      %v799 = vpop.f32.mrf.mxu0
      %v800 = vadd.f32 %v304, %v799
      %v801 = vpop.f32.mrf.mxu0
      %v802 = vpop.f32.mrf.mxu0
      %v803 = vadd.f32 %v304, %v802
      %v804 = vpop.f32.mrf.mxu0
      %805 = vmatprep.mubr.bf16.mxu0 0
      %806 = vmatmul.mubr.bf16.gmra.mxu0 %v558
      %v807 = vpop.f32.mrf.mxu0
      %v808 = vadd.f32 %v304, %v807
      %v809 = vpop.f32.mrf.mxu0
      %v810 = vpop.f32.mrf.mxu0
      %v811 = vadd.f32 %v304, %v810
      %v812 = vpop.f32.mrf.mxu0
      %813 = vmatprep.mubr.bf16.mxu0 0
      %814 = vmatmul.mubr.bf16.gmra.mxu0 %v561
      %v815 = vpop.f32.mrf.mxu0
      %v816 = vadd.f32 %v304, %v815
      %v817 = vpop.f32.mrf.mxu0
      %v818 = vpop.f32.mrf.mxu0
      %v819 = vadd.f32 %v304, %v818
      %v820 = vpop.f32.mrf.mxu0
      %821 = vmatprep.mubr.bf16.mxu0 0
      %822 = vmatmul.mubr.bf16.gmra.mxu0 %v564
      %v823 = vpop.f32.mrf.mxu0
      %v824 = vadd.f32 %v304, %v823
      %v825 = vpop.f32.mrf.mxu0
      %v826 = vpop.f32.mrf.mxu0
      %v827 = vadd.f32 %v304, %v826
      %v828 = vpop.f32.mrf.mxu0
      %829 = vmatprep.mubr.bf16.mxu0 0
      %830 = vmatmul.mubr.bf16.gmra.mxu0 %v567
      %v831 = vpop.f32.mrf.mxu0
      %v832 = vadd.f32 %v304, %v831
      %v833 = vpop.f32.mrf.mxu0
      %v834 = vpop.f32.mrf.mxu0
      %v835 = vadd.f32 %v304, %v834
      %v836 = vpop.f32.mrf.mxu0
      %837 = vmatprep.mubr.bf16.mxu0 0
      %838 = vmatmul.mubr.bf16.gmra.mxu0 %v570
      %v839 = vpop.f32.mrf.mxu0
      %v840 = vadd.f32 %v304, %v839
      %v841 = vpop.f32.mrf.mxu0
      %v842 = vpop.f32.mrf.mxu0
      %v843 = vadd.f32 %v304, %v842
      %v844 = vpop.f32.mrf.mxu0
      %845 = vmatprep.mubr.bf16.mxu0 0
      %846 = vmatmul.mubr.bf16.gmra.mxu0 %v573
      %v847 = vpop.f32.mrf.mxu0
      %v848 = vadd.f32 %v304, %v847
      %v849 = vpop.f32.mrf.mxu0
      %v850 = vpop.f32.mrf.mxu0
      %v851 = vadd.f32 %v304, %v850
      %v852 = vpop.f32.mrf.mxu0
      %853 = vmatprep.mubr.bf16.mxu0 0
      %854 = vmatmul.mubr.bf16.gmra.mxu0 %v576
      %v855 = vpop.f32.mrf.mxu0
      %v856 = vadd.f32 %v304, %v855
      %v857 = vpop.f32.mrf.mxu0
      %v858 = vpop.f32.mrf.mxu0
      %v859 = vadd.f32 %v304, %v858
      %v860 = vpop.f32.mrf.mxu0
      %861 = vmatprep.mubr.bf16.mxu0 0
      %862 = vmatmul.mubr.bf16.gmra.mxu0 %v579
      %v863 = vpop.f32.mrf.mxu0
      %v864 = vadd.f32 %v304, %v863
      %v865 = vpop.f32.mrf.mxu0
      %v866 = vpop.f32.mrf.mxu0
      %v867 = vadd.f32 %v304, %v866
      %v868 = vpop.f32.mrf.mxu0
      %869 = vdwg.mxu0
      %v870 = vmax.f32 %v616, 0.0
      %v871 = vmax.f32 %v619, 0.0
      %v872 = vmax.f32 %v624, 0.0
      %v873 = vmax.f32 %v627, 0.0
      %v874 = vmax.f32 %v632, 0.0
      %v875 = vmax.f32 %v635, 0.0
      %v876 = vmax.f32 %v640, 0.0
      %v877 = vmax.f32 %v643, 0.0
      %v878 = vmax.f32 %v648, 0.0
      %v879 = vmax.f32 %v651, 0.0
      %v880 = vmax.f32 %v656, 0.0
      %v881 = vmax.f32 %v659, 0.0
      %v882 = vmax.f32 %v664, 0.0
      %v883 = vmax.f32 %v667, 0.0
      %v884 = vmax.f32 %v672, 0.0
      %v885 = vmax.f32 %v675, 0.0
      %v886 = vmax.f32 %v680, 0.0
      %v887 = vmax.f32 %v683, 0.0
      %v888 = vmax.f32 %v688, 0.0
      %v889 = vmax.f32 %v691, 0.0
      %v890 = vmax.f32 %v696, 0.0
      %v891 = vmax.f32 %v699, 0.0
      %v892 = vmax.f32 %v704, 0.0
      %v893 = vmax.f32 %v707, 0.0
      %v894 = vmax.f32 %v712, 0.0
      %v895 = vmax.f32 %v715, 0.0
      %v896 = vmax.f32 %v720, 0.0
      %v897 = vmax.f32 %v723, 0.0
      %v898 = vmax.f32 %v728, 0.0
      %v899 = vmax.f32 %v731, 0.0
      %v900 = vmax.f32 %v736, 0.0
      %v901 = vmax.f32 %v739, 0.0
      %v902 = vmax.f32 %v744, 0.0
      %v903 = vmax.f32 %v747, 0.0
      %v904 = vmax.f32 %v752, 0.0
      %v905 = vmax.f32 %v755, 0.0
      %v906 = vmax.f32 %v760, 0.0
      %v907 = vmax.f32 %v763, 0.0
      %v908 = vmax.f32 %v768, 0.0
      %v909 = vmax.f32 %v771, 0.0
      %v910 = vmax.f32 %v776, 0.0
      %v911 = vmax.f32 %v779, 0.0
      %v912 = vmax.f32 %v784, 0.0
      %v913 = vmax.f32 %v787, 0.0
      %v914 = vmax.f32 %v792, 0.0
      %v915 = vmax.f32 %v795, 0.0
      %v916 = vmax.f32 %v800, 0.0
      %v917 = vmax.f32 %v803, 0.0
      %v918 = vmax.f32 %v808, 0.0
      %v919 = vmax.f32 %v811, 0.0
      %v920 = vmax.f32 %v816, 0.0
      %v921 = vmax.f32 %v819, 0.0
      %v922 = vmax.f32 %v824, 0.0
      %v923 = vmax.f32 %v827, 0.0
      %v924 = vmax.f32 %v832, 0.0
      %v925 = vmax.f32 %v835, 0.0
      %v926 = vmax.f32 %v840, 0.0
      %v927 = vmax.f32 %v843, 0.0
      %v928 = vmax.f32 %v848, 0.0
      %v929 = vmax.f32 %v851, 0.0
      %v930 = vmax.f32 %v856, 0.0
      %v931 = vmax.f32 %v859, 0.0
      %v932 = vmax.f32 %v864, 0.0
      %v933 = vmax.f32 %v867, 0.0
      %v934 = vpack.c.bf16 %v871, %v870
      %v935 = vpack.c.bf16 %v873, %v872
      %v936 = vpack.c.bf16 %v875, %v874
      %v937 = vpack.c.bf16 %v877, %v876
      %v938 = vpack.c.bf16 %v879, %v878
      %v939 = vpack.c.bf16 %v881, %v880
      %v940 = vpack.c.bf16 %v883, %v882
      %v941 = vpack.c.bf16 %v885, %v884
      %v942 = vpack.c.bf16 %v887, %v886
      %v943 = vpack.c.bf16 %v889, %v888
      %v944 = vpack.c.bf16 %v891, %v890
      %v945 = vpack.c.bf16 %v893, %v892
      %v946 = vpack.c.bf16 %v895, %v894
      %v947 = vpack.c.bf16 %v897, %v896
      %v948 = vpack.c.bf16 %v899, %v898
      %v949 = vpack.c.bf16 %v901, %v900
      %v950 = vpack.c.bf16 %v903, %v902
      %v951 = vpack.c.bf16 %v905, %v904
      %v952 = vpack.c.bf16 %v907, %v906
      %v953 = vpack.c.bf16 %v909, %v908
      %v954 = vpack.c.bf16 %v911, %v910
      %v955 = vpack.c.bf16 %v913, %v912
      %v956 = vpack.c.bf16 %v915, %v914
      %v957 = vpack.c.bf16 %v917, %v916
      %v958 = vpack.c.bf16 %v919, %v918
      %v959 = vpack.c.bf16 %v921, %v920
      %v960 = vpack.c.bf16 %v923, %v922
      %v961 = vpack.c.bf16 %v925, %v924
      %v962 = vpack.c.bf16 %v927, %v926
      %v963 = vpack.c.bf16 %v929, %v928
      %v964 = vpack.c.bf16 %v931, %v930
      %v965 = vpack.c.bf16 %v933, %v932
      %v966 = vld [vmem:[%s3] sm:$0xf]
      %v967 = vld [vmem:[%s3 + $0x4] sm:$0xf]
      %v968 = vld [vmem:[%s3 + $0x8] sm:$0xf]
      %v969 = vld [vmem:[%s3 + $0xc] sm:$0xf]
      %v970 = vld [vmem:[%s3 + $0x10] sm:$0xf]
      %v971 = vld [vmem:[%s3 + $0x14] sm:$0xf]
      %v972 = vld [vmem:[%s3 + $0x18] sm:$0xf]
      %v973 = vld [vmem:[%s3 + $0x1c] sm:$0xf]
      %v974 = vld [vmem:[%s4] sm:$0x1]
      %v976 = vlaneseq
      %v977 = vshrl.u32 %v976, 7
      %v978 = vsub.s32 0, %v977
      %v979 = vrot.slane %v974, %v978
      %v989 = vunpack.c.l.b16 %v966
      %v990 = vunpack.c.l.b16 %v967
      %v991 = vunpack.c.l.b16 %v968
      %v992 = vunpack.c.l.b16 %v969
      %v993 = vunpack.c.l.b16 %v970
      %v994 = vunpack.c.l.b16 %v971
      %v995 = vunpack.c.l.b16 %v972
      %v996 = vunpack.c.l.b16 %v973
      %v997 = vpack.c.b16 %v990, %v989
      %v998 = vpack.c.b16 %v992, %v991
      %v999 = vpack.c.b16 %v994, %v993
      %v1000 = vpack.c.b16 %v996, %v995
      %vm1005 = vcmask 523264
      %v1007 = vsel %vm1005, %v934, 0
      %v1010 = vsel %vm1005, %v935, 0
      %v1013 = vsel %vm1005, %v936, 0
      %v1016 = vsel %vm1005, %v937, 0
      %v1019 = vsel %vm1005, %v938, 0
      %v1022 = vsel %vm1005, %v939, 0
      %v1025 = vsel %vm1005, %v940, 0
      %v1028 = vsel %vm1005, %v941, 0
      %v1031 = vsel %vm1005, %v942, 0
      %v1034 = vsel %vm1005, %v943, 0
      %v1037 = vsel %vm1005, %v944, 0
      %v1040 = vsel %vm1005, %v945, 0
      %v1043 = vsel %vm1005, %v946, 0
      %v1046 = vsel %vm1005, %v947, 0
      %v1049 = vsel %vm1005, %v948, 0
      %v1052 = vsel %vm1005, %v949, 0
      %v1055 = vsel %vm1005, %v950, 0
      %v1058 = vsel %vm1005, %v951, 0
      %v1061 = vsel %vm1005, %v952, 0
      %v1064 = vsel %vm1005, %v953, 0
      %v1067 = vsel %vm1005, %v954, 0
      %v1070 = vsel %vm1005, %v955, 0
      %v1073 = vsel %vm1005, %v956, 0
      %v1076 = vsel %vm1005, %v957, 0
      %v1079 = vsel %vm1005, %v958, 0
      %v1082 = vsel %vm1005, %v959, 0
      %v1085 = vsel %vm1005, %v960, 0
      %v1088 = vsel %vm1005, %v961, 0
      %v1091 = vsel %vm1005, %v962, 0
      %v1094 = vsel %vm1005, %v963, 0
      %v1097 = vsel %vm1005, %v964, 0
      %v1100 = vsel %vm1005, %v965, 0
      %1102 = vmatprep.subr.bf16.mxu0 0
      %1103 = vmatpush1.bf16.msra.mxu0 0
      %1104 = vmatprep.subr.bf16.mxu0 0
      %1105 = vmatpush1.bf16.msra.mxu0 0
      %1106 = vmatprep.subr.bf16.mxu0 0
      %1107 = vmatpush1.bf16.msra.mxu0 0
      %1108 = vmatprep.subr.bf16.mxu0 0
      %1109 = vmatpush1.bf16.msra.mxu0 0
      %1110 = vmatprep.subr.bf16.mxu0 0
      %1111 = vmatpush1.bf16.msra.mxu0 %v1000
      %1112 = vmatprep.subr.bf16.mxu0 0
      %1113 = vmatpush1.bf16.msra.mxu0 %v999
      %1114 = vmatprep.subr.bf16.mxu0 0
      %1115 = vmatpush1.bf16.msra.mxu0 %v998
      %1116 = vmatprep.subr.bf16.mxu0 0
      %1117 = vmatpush1.bf16.msra.mxu0 %v997
      %1118 = vmatprep.subr.bf16.mxu0 0
      %1119 = vmatpush2.bf16.msra.mxu0 0
      %1120 = vmatprep.subr.bf16.mxu0 0
      %1121 = vmatpush2.bf16.msra.mxu0 0
      %1122 = vmatprep.subr.bf16.mxu0 0
      %1123 = vmatpush2.bf16.msra.mxu0 0
      %1124 = vmatprep.subr.bf16.mxu0 0
      %1125 = vmatpush2.bf16.msra.mxu0 0
      %1126 = vmatprep.subr.bf16.mxu0 0
      %1127 = vmatpush2.bf16.msra.mxu0 0
      %1128 = vmatprep.subr.bf16.mxu0 0
      %1129 = vmatpush2.bf16.msra.mxu0 0
      %1130 = vmatprep.subr.bf16.mxu0 0
      %1131 = vmatpush2.bf16.msra.mxu0 0
      %1132 = vmatprep.subr.bf16.mxu0 0
      %1133 = vmatpush2.bf16.msra.mxu0 0
      %1134 = vmatprep.mubr.bf16.mxu0 0
      %1135 = vmatmul.mubr.bf16.gmra.mxu0 %v1007
      %v1136 = vpop.f32.mrf.mxu0
      %v1137 = vadd.f32 %v979, %v1136
      %v1138 = vpop.f32.mrf.mxu0
      %v1139 = vpop.f32.mrf.mxu0
      %v1140 = vadd.f32 %v979, %v1139
      %v1141 = vpop.f32.mrf.mxu0
      %1142 = vmatprep.mubr.bf16.mxu0 0
      %1143 = vmatmul.mubr.bf16.gmra.mxu0 %v1010
      %v1144 = vpop.f32.mrf.mxu0
      %v1145 = vadd.f32 %v979, %v1144
      %v1146 = vpop.f32.mrf.mxu0
      %v1147 = vpop.f32.mrf.mxu0
      %v1148 = vadd.f32 %v979, %v1147
      %v1149 = vpop.f32.mrf.mxu0
      %1150 = vmatprep.mubr.bf16.mxu0 0
      %1151 = vmatmul.mubr.bf16.gmra.mxu0 %v1013
      %v1152 = vpop.f32.mrf.mxu0
      %v1153 = vadd.f32 %v979, %v1152
      %v1154 = vpop.f32.mrf.mxu0
      %v1155 = vpop.f32.mrf.mxu0
      %v1156 = vadd.f32 %v979, %v1155
      %v1157 = vpop.f32.mrf.mxu0
      %1158 = vmatprep.mubr.bf16.mxu0 0
      %1159 = vmatmul.mubr.bf16.gmra.mxu0 %v1016
      %v1160 = vpop.f32.mrf.mxu0
      %v1161 = vadd.f32 %v979, %v1160
      %v1162 = vpop.f32.mrf.mxu0
      %v1163 = vpop.f32.mrf.mxu0
      %v1164 = vadd.f32 %v979, %v1163
      %v1165 = vpop.f32.mrf.mxu0
      %1166 = vmatprep.mubr.bf16.mxu0 0
      %1167 = vmatmul.mubr.bf16.gmra.mxu0 %v1019
      %v1168 = vpop.f32.mrf.mxu0
      %v1169 = vadd.f32 %v979, %v1168
      %v1170 = vpop.f32.mrf.mxu0
      %v1171 = vpop.f32.mrf.mxu0
      %v1172 = vadd.f32 %v979, %v1171
      %v1173 = vpop.f32.mrf.mxu0
      %1174 = vmatprep.mubr.bf16.mxu0 0
      %1175 = vmatmul.mubr.bf16.gmra.mxu0 %v1022
      %v1176 = vpop.f32.mrf.mxu0
      %v1177 = vadd.f32 %v979, %v1176
      %v1178 = vpop.f32.mrf.mxu0
      %v1179 = vpop.f32.mrf.mxu0
      %v1180 = vadd.f32 %v979, %v1179
      %v1181 = vpop.f32.mrf.mxu0
      %1182 = vmatprep.mubr.bf16.mxu0 0
      %1183 = vmatmul.mubr.bf16.gmra.mxu0 %v1025
      %v1184 = vpop.f32.mrf.mxu0
      %v1185 = vadd.f32 %v979, %v1184
      %v1186 = vpop.f32.mrf.mxu0
      %v1187 = vpop.f32.mrf.mxu0
      %v1188 = vadd.f32 %v979, %v1187
      %v1189 = vpop.f32.mrf.mxu0
      %1190 = vmatprep.mubr.bf16.mxu0 0
      %1191 = vmatmul.mubr.bf16.gmra.mxu0 %v1028
      %v1192 = vpop.f32.mrf.mxu0
      %v1193 = vadd.f32 %v979, %v1192
      %v1194 = vpop.f32.mrf.mxu0
      %v1195 = vpop.f32.mrf.mxu0
      %v1196 = vadd.f32 %v979, %v1195
      %v1197 = vpop.f32.mrf.mxu0
      %1198 = vmatprep.mubr.bf16.mxu0 0
      %1199 = vmatmul.mubr.bf16.gmra.mxu0 %v1031
      %v1200 = vpop.f32.mrf.mxu0
      %v1201 = vadd.f32 %v979, %v1200
      %v1202 = vpop.f32.mrf.mxu0
      %v1203 = vpop.f32.mrf.mxu0
      %v1204 = vadd.f32 %v979, %v1203
      %v1205 = vpop.f32.mrf.mxu0
      %1206 = vmatprep.mubr.bf16.mxu0 0
      %1207 = vmatmul.mubr.bf16.gmra.mxu0 %v1034
      %v1208 = vpop.f32.mrf.mxu0
      %v1209 = vadd.f32 %v979, %v1208
      %v1210 = vpop.f32.mrf.mxu0
      %v1211 = vpop.f32.mrf.mxu0
      %v1212 = vadd.f32 %v979, %v1211
      %v1213 = vpop.f32.mrf.mxu0
      %1214 = vmatprep.mubr.bf16.mxu0 0
      %1215 = vmatmul.mubr.bf16.gmra.mxu0 %v1037
      %v1216 = vpop.f32.mrf.mxu0
      %v1217 = vadd.f32 %v979, %v1216
      %v1218 = vpop.f32.mrf.mxu0
      %v1219 = vpop.f32.mrf.mxu0
      %v1220 = vadd.f32 %v979, %v1219
      %v1221 = vpop.f32.mrf.mxu0
      %1222 = vmatprep.mubr.bf16.mxu0 0
      %1223 = vmatmul.mubr.bf16.gmra.mxu0 %v1040
      %v1224 = vpop.f32.mrf.mxu0
      %v1225 = vadd.f32 %v979, %v1224
      %v1226 = vpop.f32.mrf.mxu0
      %v1227 = vpop.f32.mrf.mxu0
      %v1228 = vadd.f32 %v979, %v1227
      %v1229 = vpop.f32.mrf.mxu0
      %1230 = vmatprep.mubr.bf16.mxu0 0
      %1231 = vmatmul.mubr.bf16.gmra.mxu0 %v1043
      %v1232 = vpop.f32.mrf.mxu0
      %v1233 = vadd.f32 %v979, %v1232
      %v1234 = vpop.f32.mrf.mxu0
      %v1235 = vpop.f32.mrf.mxu0
      %v1236 = vadd.f32 %v979, %v1235
      %v1237 = vpop.f32.mrf.mxu0
      %1238 = vmatprep.mubr.bf16.mxu0 0
      %1239 = vmatmul.mubr.bf16.gmra.mxu0 %v1046
      %v1240 = vpop.f32.mrf.mxu0
      %v1241 = vadd.f32 %v979, %v1240
      %v1242 = vpop.f32.mrf.mxu0
      %v1243 = vpop.f32.mrf.mxu0
      %v1244 = vadd.f32 %v979, %v1243
      %v1245 = vpop.f32.mrf.mxu0
      %1246 = vmatprep.mubr.bf16.mxu0 0
      %1247 = vmatmul.mubr.bf16.gmra.mxu0 %v1049
      %v1248 = vpop.f32.mrf.mxu0
      %v1249 = vadd.f32 %v979, %v1248
      %v1250 = vpop.f32.mrf.mxu0
      %v1251 = vpop.f32.mrf.mxu0
      %v1252 = vadd.f32 %v979, %v1251
      %v1253 = vpop.f32.mrf.mxu0
      %1254 = vmatprep.mubr.bf16.mxu0 0
      %1255 = vmatmul.mubr.bf16.gmra.mxu0 %v1052
      %v1256 = vpop.f32.mrf.mxu0
      %v1257 = vadd.f32 %v979, %v1256
      %v1258 = vpop.f32.mrf.mxu0
      %v1259 = vpop.f32.mrf.mxu0
      %v1260 = vadd.f32 %v979, %v1259
      %v1261 = vpop.f32.mrf.mxu0
      %1262 = vmatprep.mubr.bf16.mxu0 0
      %1263 = vmatmul.mubr.bf16.gmra.mxu0 %v1055
      %v1264 = vpop.f32.mrf.mxu0
      %v1265 = vadd.f32 %v979, %v1264
      %v1266 = vpop.f32.mrf.mxu0
      %v1267 = vpop.f32.mrf.mxu0
      %v1268 = vadd.f32 %v979, %v1267
      %v1269 = vpop.f32.mrf.mxu0
      %1270 = vmatprep.mubr.bf16.mxu0 0
      %1271 = vmatmul.mubr.bf16.gmra.mxu0 %v1058
      %v1272 = vpop.f32.mrf.mxu0
      %v1273 = vadd.f32 %v979, %v1272
      %v1274 = vpop.f32.mrf.mxu0
      %v1275 = vpop.f32.mrf.mxu0
      %v1276 = vadd.f32 %v979, %v1275
      %v1277 = vpop.f32.mrf.mxu0
      %1278 = vmatprep.mubr.bf16.mxu0 0
      %1279 = vmatmul.mubr.bf16.gmra.mxu0 %v1061
      %v1280 = vpop.f32.mrf.mxu0
      %v1281 = vadd.f32 %v979, %v1280
      %v1282 = vpop.f32.mrf.mxu0
      %v1283 = vpop.f32.mrf.mxu0
      %v1284 = vadd.f32 %v979, %v1283
      %v1285 = vpop.f32.mrf.mxu0
      %1286 = vmatprep.mubr.bf16.mxu0 0
      %1287 = vmatmul.mubr.bf16.gmra.mxu0 %v1064
      %v1288 = vpop.f32.mrf.mxu0
      %v1289 = vadd.f32 %v979, %v1288
      %v1290 = vpop.f32.mrf.mxu0
      %v1291 = vpop.f32.mrf.mxu0
      %v1292 = vadd.f32 %v979, %v1291
      %v1293 = vpop.f32.mrf.mxu0
      %1294 = vmatprep.mubr.bf16.mxu0 0
      %1295 = vmatmul.mubr.bf16.gmra.mxu0 %v1067
      %v1296 = vpop.f32.mrf.mxu0
      %v1297 = vadd.f32 %v979, %v1296
      %v1298 = vpop.f32.mrf.mxu0
      %v1299 = vpop.f32.mrf.mxu0
      %v1300 = vadd.f32 %v979, %v1299
      %v1301 = vpop.f32.mrf.mxu0
      %1302 = vmatprep.mubr.bf16.mxu0 0
      %1303 = vmatmul.mubr.bf16.gmra.mxu0 %v1070
      %v1304 = vpop.f32.mrf.mxu0
      %v1305 = vadd.f32 %v979, %v1304
      %v1306 = vpop.f32.mrf.mxu0
      %v1307 = vpop.f32.mrf.mxu0
      %v1308 = vadd.f32 %v979, %v1307
      %v1309 = vpop.f32.mrf.mxu0
      %1310 = vmatprep.mubr.bf16.mxu0 0
      %1311 = vmatmul.mubr.bf16.gmra.mxu0 %v1073
      %v1312 = vpop.f32.mrf.mxu0
      %v1313 = vadd.f32 %v979, %v1312
      %v1314 = vpop.f32.mrf.mxu0
      %v1315 = vpop.f32.mrf.mxu0
      %v1316 = vadd.f32 %v979, %v1315
      %v1317 = vpop.f32.mrf.mxu0
      %1318 = vmatprep.mubr.bf16.mxu0 0
      %1319 = vmatmul.mubr.bf16.gmra.mxu0 %v1076
      %v1320 = vpop.f32.mrf.mxu0
      %v1321 = vadd.f32 %v979, %v1320
      %v1322 = vpop.f32.mrf.mxu0
      %v1323 = vpop.f32.mrf.mxu0
      %v1324 = vadd.f32 %v979, %v1323
      %v1325 = vpop.f32.mrf.mxu0
      %1326 = vmatprep.mubr.bf16.mxu0 0
      %1327 = vmatmul.mubr.bf16.gmra.mxu0 %v1079
      %v1328 = vpop.f32.mrf.mxu0
      %v1329 = vadd.f32 %v979, %v1328
      %v1330 = vpop.f32.mrf.mxu0
      %v1331 = vpop.f32.mrf.mxu0
      %v1332 = vadd.f32 %v979, %v1331
      %v1333 = vpop.f32.mrf.mxu0
      %1334 = vmatprep.mubr.bf16.mxu0 0
      %1335 = vmatmul.mubr.bf16.gmra.mxu0 %v1082
      %v1336 = vpop.f32.mrf.mxu0
      %v1337 = vadd.f32 %v979, %v1336
      %v1338 = vpop.f32.mrf.mxu0
      %v1339 = vpop.f32.mrf.mxu0
      %v1340 = vadd.f32 %v979, %v1339
      %v1341 = vpop.f32.mrf.mxu0
      %1342 = vmatprep.mubr.bf16.mxu0 0
      %1343 = vmatmul.mubr.bf16.gmra.mxu0 %v1085
      %v1344 = vpop.f32.mrf.mxu0
      %v1345 = vadd.f32 %v979, %v1344
      %v1346 = vpop.f32.mrf.mxu0
      %v1347 = vpop.f32.mrf.mxu0
      %v1348 = vadd.f32 %v979, %v1347
      %v1349 = vpop.f32.mrf.mxu0
      %1350 = vmatprep.mubr.bf16.mxu0 0
      %1351 = vmatmul.mubr.bf16.gmra.mxu0 %v1088
      %v1352 = vpop.f32.mrf.mxu0
      %v1353 = vadd.f32 %v979, %v1352
      %v1354 = vpop.f32.mrf.mxu0
      %v1355 = vpop.f32.mrf.mxu0
      %v1356 = vadd.f32 %v979, %v1355
      %v1357 = vpop.f32.mrf.mxu0
      %1358 = vmatprep.mubr.bf16.mxu0 0
      %1359 = vmatmul.mubr.bf16.gmra.mxu0 %v1091
      %v1360 = vpop.f32.mrf.mxu0
      %v1361 = vadd.f32 %v979, %v1360
      %v1362 = vpop.f32.mrf.mxu0
      %v1363 = vpop.f32.mrf.mxu0
      %v1364 = vadd.f32 %v979, %v1363
      %v1365 = vpop.f32.mrf.mxu0
      %1366 = vmatprep.mubr.bf16.mxu0 0
      %1367 = vmatmul.mubr.bf16.gmra.mxu0 %v1094
      %v1368 = vpop.f32.mrf.mxu0
      %v1369 = vadd.f32 %v979, %v1368
      %v1370 = vpop.f32.mrf.mxu0
      %v1371 = vpop.f32.mrf.mxu0
      %v1372 = vadd.f32 %v979, %v1371
      %v1373 = vpop.f32.mrf.mxu0
      %1374 = vmatprep.mubr.bf16.mxu0 0
      %1375 = vmatmul.mubr.bf16.gmra.mxu0 %v1097
      %v1376 = vpop.f32.mrf.mxu0
      %v1377 = vadd.f32 %v979, %v1376
      %v1378 = vpop.f32.mrf.mxu0
      %v1379 = vpop.f32.mrf.mxu0
      %v1380 = vadd.f32 %v979, %v1379
      %v1381 = vpop.f32.mrf.mxu0
      %1382 = vmatprep.mubr.bf16.mxu0 0
      %1383 = vmatmul.mubr.bf16.gmra.mxu0 %v1100
      %v1384 = vpop.f32.mrf.mxu0
      %v1385 = vadd.f32 %v979, %v1384
      %v1386 = vpop.f32.mrf.mxu0
      %v1387 = vpop.f32.mrf.mxu0
      %v1388 = vadd.f32 %v979, %v1387
      %v1389 = vpop.f32.mrf.mxu0
      %1390 = vdwg.mxu0
      %1391 = vst.msk [vmem:[%s226] sm:$0xff] %vm1005, %v870
      %1392 = vst.msk [vmem:[%s226 + $0x8] sm:$0xff] %vm1005, %v871
      %1393 = vst.msk [vmem:[%s226 + $0x10] sm:$0xff] %vm1005, %v872
      %1394 = vst.msk [vmem:[%s226 + $0x18] sm:$0xff] %vm1005, %v873
      %1395 = vst.msk [vmem:[%s226 + $0x20] sm:$0xff] %vm1005, %v874
      %1396 = vst.msk [vmem:[%s226 + $0x28] sm:$0xff] %vm1005, %v875
      %1397 = vst.msk [vmem:[%s226 + $0x30] sm:$0xff] %vm1005, %v876
      %1398 = vst.msk [vmem:[%s226 + $0x38] sm:$0xff] %vm1005, %v877
      %1399 = vst.msk [vmem:[%s226 + $0x40] sm:$0xff] %vm1005, %v878
      %1400 = vst.msk [vmem:[%s226 + $0x48] sm:$0xff] %vm1005, %v879
      %1401 = vst.msk [vmem:[%s226 + $0x50] sm:$0xff] %vm1005, %v880
      %1402 = vst.msk [vmem:[%s226 + $0x58] sm:$0xff] %vm1005, %v881
      %1403 = vst.msk [vmem:[%s226 + $0x60] sm:$0xff] %vm1005, %v882
      %1404 = vst.msk [vmem:[%s226 + $0x68] sm:$0xff] %vm1005, %v883
      %1405 = vst.msk [vmem:[%s226 + $0x70] sm:$0xff] %vm1005, %v884
      %1406 = vst.msk [vmem:[%s226 + $0x78] sm:$0xff] %vm1005, %v885
      %1407 = vst.msk [vmem:[%s226 + $0x80] sm:$0xff] %vm1005, %v886
      %1408 = vst.msk [vmem:[%s226 + $0x88] sm:$0xff] %vm1005, %v887
      %1409 = vst.msk [vmem:[%s226 + $0x90] sm:$0xff] %vm1005, %v888
      %1410 = vst.msk [vmem:[%s226 + $0x98] sm:$0xff] %vm1005, %v889
      %1411 = vst.msk [vmem:[%s226 + $0xa0] sm:$0xff] %vm1005, %v890
      %1412 = vst.msk [vmem:[%s226 + $0xa8] sm:$0xff] %vm1005, %v891
      %1413 = vst.msk [vmem:[%s226 + $0xb0] sm:$0xff] %vm1005, %v892
      %1414 = vst.msk [vmem:[%s226 + $0xb8] sm:$0xff] %vm1005, %v893
      %1415 = vst.msk [vmem:[%s226 + $0xc0] sm:$0xff] %vm1005, %v894
      %1416 = vst.msk [vmem:[%s226 + $0xc8] sm:$0xff] %vm1005, %v895
      %1417 = vst.msk [vmem:[%s226 + $0xd0] sm:$0xff] %vm1005, %v896
      %1418 = vst.msk [vmem:[%s226 + $0xd8] sm:$0xff] %vm1005, %v897
      %1419 = vst.msk [vmem:[%s226 + $0xe0] sm:$0xff] %vm1005, %v898
      %1420 = vst.msk [vmem:[%s226 + $0xe8] sm:$0xff] %vm1005, %v899
      %1421 = vst.msk [vmem:[%s226 + $0xf0] sm:$0xff] %vm1005, %v900
      %1422 = vst.msk [vmem:[%s226 + $0xf8] sm:$0xff] %vm1005, %v901
      %1423 = vst.msk [vmem:[%s226 + $0x100] sm:$0xff] %vm1005, %v902
      %1424 = vst.msk [vmem:[%s226 + $0x108] sm:$0xff] %vm1005, %v903
      %1425 = vst.msk [vmem:[%s226 + $0x110] sm:$0xff] %vm1005, %v904
      %1426 = vst.msk [vmem:[%s226 + $0x118] sm:$0xff] %vm1005, %v905
      %1427 = vst.msk [vmem:[%s226 + $0x120] sm:$0xff] %vm1005, %v906
      %1428 = vst.msk [vmem:[%s226 + $0x128] sm:$0xff] %vm1005, %v907
      %1429 = vst.msk [vmem:[%s226 + $0x130] sm:$0xff] %vm1005, %v908
      %1430 = vst.msk [vmem:[%s226 + $0x138] sm:$0xff] %vm1005, %v909
      %1431 = vst.msk [vmem:[%s226 + $0x140] sm:$0xff] %vm1005, %v910
      %1432 = vst.msk [vmem:[%s226 + $0x148] sm:$0xff] %vm1005, %v911
      %1433 = vst.msk [vmem:[%s226 + $0x150] sm:$0xff] %vm1005, %v912
      %1434 = vst.msk [vmem:[%s226 + $0x158] sm:$0xff] %vm1005, %v913
      %1435 = vst.msk [vmem:[%s226 + $0x160] sm:$0xff] %vm1005, %v914
      %1436 = vst.msk [vmem:[%s226 + $0x168] sm:$0xff] %vm1005, %v915
      %1437 = vst.msk [vmem:[%s226 + $0x170] sm:$0xff] %vm1005, %v916
      %1438 = vst.msk [vmem:[%s226 + $0x178] sm:$0xff] %vm1005, %v917
      %1439 = vst.msk [vmem:[%s226 + $0x180] sm:$0xff] %vm1005, %v918
      %1440 = vst.msk [vmem:[%s226 + $0x188] sm:$0xff] %vm1005, %v919
      %1441 = vst.msk [vmem:[%s226 + $0x190] sm:$0xff] %vm1005, %v920
      %1442 = vst.msk [vmem:[%s226 + $0x198] sm:$0xff] %vm1005, %v921
      %1443 = vst.msk [vmem:[%s226 + $0x1a0] sm:$0xff] %vm1005, %v922
      %1444 = vst.msk [vmem:[%s226 + $0x1a8] sm:$0xff] %vm1005, %v923
      %1445 = vst.msk [vmem:[%s226 + $0x1b0] sm:$0xff] %vm1005, %v924
      %1446 = vst.msk [vmem:[%s226 + $0x1b8] sm:$0xff] %vm1005, %v925
      %1447 = vst.msk [vmem:[%s226 + $0x1c0] sm:$0xff] %vm1005, %v926
      %1448 = vst.msk [vmem:[%s226 + $0x1c8] sm:$0xff] %vm1005, %v927
      %1449 = vst.msk [vmem:[%s226 + $0x1d0] sm:$0xff] %vm1005, %v928
      %1450 = vst.msk [vmem:[%s226 + $0x1d8] sm:$0xff] %vm1005, %v929
      %1451 = vst.msk [vmem:[%s226 + $0x1e0] sm:$0xff] %vm1005, %v930
      %1452 = vst.msk [vmem:[%s226 + $0x1e8] sm:$0xff] %vm1005, %v931
      %1453 = vst.msk [vmem:[%s226 + $0x1f0] sm:$0xff] %vm1005, %v932
      %1454 = vst.msk [vmem:[%s226 + $0x1f8] sm:$0xff] %vm1005, %v933
      %1519 = vrot.lane.b32.xlu0 %v1137, 64
      %v1520 = vpop.permute.xlu0 %1519
      %1521 = vrot.lane.b32.xlu0 %v1140, 64
      %v1522 = vpop.permute.xlu0 %1521
      %1523 = vrot.lane.b32.xlu0 %v1145, 64
      %v1524 = vpop.permute.xlu0 %1523
      %1525 = vrot.lane.b32.xlu0 %v1148, 64
      %v1526 = vpop.permute.xlu0 %1525
      %1527 = vrot.lane.b32.xlu0 %v1153, 64
      %v1528 = vpop.permute.xlu0 %1527
      %1529 = vrot.lane.b32.xlu0 %v1156, 64
      %v1530 = vpop.permute.xlu0 %1529
      %1531 = vrot.lane.b32.xlu0 %v1161, 64
      %v1532 = vpop.permute.xlu0 %1531
      %1533 = vrot.lane.b32.xlu0 %v1164, 64
      %v1534 = vpop.permute.xlu0 %1533
      %1535 = vrot.lane.b32.xlu0 %v1169, 64
      %v1536 = vpop.permute.xlu0 %1535
      %1537 = vrot.lane.b32.xlu0 %v1172, 64
      %v1538 = vpop.permute.xlu0 %1537
      %1539 = vrot.lane.b32.xlu0 %v1177, 64
      %v1540 = vpop.permute.xlu0 %1539
      %1541 = vrot.lane.b32.xlu0 %v1180, 64
      %v1542 = vpop.permute.xlu0 %1541
      %1543 = vrot.lane.b32.xlu0 %v1185, 64
      %v1544 = vpop.permute.xlu0 %1543
      %1545 = vrot.lane.b32.xlu0 %v1188, 64
      %v1546 = vpop.permute.xlu0 %1545
      %1547 = vrot.lane.b32.xlu0 %v1193, 64
      %v1548 = vpop.permute.xlu0 %1547
      %1549 = vrot.lane.b32.xlu0 %v1196, 64
      %v1550 = vpop.permute.xlu0 %1549
      %1551 = vrot.lane.b32.xlu0 %v1201, 64
      %v1552 = vpop.permute.xlu0 %1551
      %1553 = vrot.lane.b32.xlu0 %v1204, 64
      %v1554 = vpop.permute.xlu0 %1553
      %1555 = vrot.lane.b32.xlu0 %v1209, 64
      %v1556 = vpop.permute.xlu0 %1555
      %1557 = vrot.lane.b32.xlu0 %v1212, 64
      %v1558 = vpop.permute.xlu0 %1557
      %1559 = vrot.lane.b32.xlu0 %v1217, 64
      %v1560 = vpop.permute.xlu0 %1559
      %1561 = vrot.lane.b32.xlu0 %v1220, 64
      %v1562 = vpop.permute.xlu0 %1561
      %1563 = vrot.lane.b32.xlu0 %v1225, 64
      %v1564 = vpop.permute.xlu0 %1563
      %1565 = vrot.lane.b32.xlu0 %v1228, 64
      %v1566 = vpop.permute.xlu0 %1565
      %1567 = vrot.lane.b32.xlu0 %v1233, 64
      %v1568 = vpop.permute.xlu0 %1567
      %1569 = vrot.lane.b32.xlu0 %v1236, 64
      %v1570 = vpop.permute.xlu0 %1569
      %1571 = vrot.lane.b32.xlu0 %v1241, 64
      %v1572 = vpop.permute.xlu0 %1571
      %1573 = vrot.lane.b32.xlu0 %v1244, 64
      %v1574 = vpop.permute.xlu0 %1573
      %1575 = vrot.lane.b32.xlu0 %v1249, 64
      %v1576 = vpop.permute.xlu0 %1575
      %1577 = vrot.lane.b32.xlu0 %v1252, 64
      %v1578 = vpop.permute.xlu0 %1577
      %1579 = vrot.lane.b32.xlu0 %v1257, 64
      %v1580 = vpop.permute.xlu0 %1579
      %1581 = vrot.lane.b32.xlu0 %v1260, 64
      %v1582 = vpop.permute.xlu0 %1581
      %1583 = vrot.lane.b32.xlu0 %v1265, 64
      %v1584 = vpop.permute.xlu0 %1583
      %1585 = vrot.lane.b32.xlu0 %v1268, 64
      %v1586 = vpop.permute.xlu0 %1585
      %1587 = vrot.lane.b32.xlu0 %v1273, 64
      %v1588 = vpop.permute.xlu0 %1587
      %1589 = vrot.lane.b32.xlu0 %v1276, 64
      %v1590 = vpop.permute.xlu0 %1589
      %1591 = vrot.lane.b32.xlu0 %v1281, 64
      %v1592 = vpop.permute.xlu0 %1591
      %1593 = vrot.lane.b32.xlu0 %v1284, 64
      %v1594 = vpop.permute.xlu0 %1593
      %1595 = vrot.lane.b32.xlu0 %v1289, 64
      %v1596 = vpop.permute.xlu0 %1595
      %1597 = vrot.lane.b32.xlu0 %v1292, 64
      %v1598 = vpop.permute.xlu0 %1597
      %1599 = vrot.lane.b32.xlu0 %v1297, 64
      %v1600 = vpop.permute.xlu0 %1599
      %1601 = vrot.lane.b32.xlu0 %v1300, 64
      %v1602 = vpop.permute.xlu0 %1601
      %1603 = vrot.lane.b32.xlu0 %v1305, 64
      %v1604 = vpop.permute.xlu0 %1603
      %1605 = vrot.lane.b32.xlu0 %v1308, 64
      %v1606 = vpop.permute.xlu0 %1605
      %1607 = vrot.lane.b32.xlu0 %v1313, 64
      %v1608 = vpop.permute.xlu0 %1607
      %1609 = vrot.lane.b32.xlu0 %v1316, 64
      %v1610 = vpop.permute.xlu0 %1609
      %1611 = vrot.lane.b32.xlu0 %v1321, 64
      %v1612 = vpop.permute.xlu0 %1611
      %1613 = vrot.lane.b32.xlu0 %v1324, 64
      %v1614 = vpop.permute.xlu0 %1613
      %1615 = vrot.lane.b32.xlu0 %v1329, 64
      %v1616 = vpop.permute.xlu0 %1615
      %1617 = vrot.lane.b32.xlu0 %v1332, 64
      %v1618 = vpop.permute.xlu0 %1617
      %1619 = vrot.lane.b32.xlu0 %v1337, 64
      %v1620 = vpop.permute.xlu0 %1619
      %1621 = vrot.lane.b32.xlu0 %v1340, 64
      %v1622 = vpop.permute.xlu0 %1621
      %1623 = vrot.lane.b32.xlu0 %v1345, 64
      %v1624 = vpop.permute.xlu0 %1623
      %1625 = vrot.lane.b32.xlu0 %v1348, 64
      %v1626 = vpop.permute.xlu0 %1625
      %1627 = vrot.lane.b32.xlu0 %v1353, 64
      %v1628 = vpop.permute.xlu0 %1627
      %1629 = vrot.lane.b32.xlu0 %v1356, 64
      %v1630 = vpop.permute.xlu0 %1629
      %1631 = vrot.lane.b32.xlu0 %v1361, 64
      %v1632 = vpop.permute.xlu0 %1631
      %1633 = vrot.lane.b32.xlu0 %v1364, 64
      %v1634 = vpop.permute.xlu0 %1633
      %1635 = vrot.lane.b32.xlu0 %v1369, 64
      %v1636 = vpop.permute.xlu0 %1635
      %1637 = vrot.lane.b32.xlu0 %v1372, 64
      %v1638 = vpop.permute.xlu0 %1637
      %1639 = vrot.lane.b32.xlu0 %v1377, 64
      %v1640 = vpop.permute.xlu0 %1639
      %1641 = vrot.lane.b32.xlu0 %v1380, 64
      %v1642 = vpop.permute.xlu0 %1641
      %1643 = vrot.lane.b32.xlu0 %v1385, 64
      %v1644 = vpop.permute.xlu0 %1643
      %1645 = vrot.lane.b32.xlu0 %v1388, 64
      %v1646 = vpop.permute.xlu0 %1645
      %vm1711 = vcmask 998912
      %1712 = vst.msk [vmem:[%s226] sm:$0xff] %vm1711, %v1520
      %1713 = vst.msk [vmem:[%s226 + $0x8] sm:$0xff] %vm1711, %v1522
      %1714 = vst.msk [vmem:[%s226 + $0x10] sm:$0xff] %vm1711, %v1524
      %1715 = vst.msk [vmem:[%s226 + $0x18] sm:$0xff] %vm1711, %v1526
      %1716 = vst.msk [vmem:[%s226 + $0x20] sm:$0xff] %vm1711, %v1528
      %1717 = vst.msk [vmem:[%s226 + $0x28] sm:$0xff] %vm1711, %v1530
      %1718 = vst.msk [vmem:[%s226 + $0x30] sm:$0xff] %vm1711, %v1532
      %1719 = vst.msk [vmem:[%s226 + $0x38] sm:$0xff] %vm1711, %v1534
      %1720 = vst.msk [vmem:[%s226 + $0x40] sm:$0xff] %vm1711, %v1536
      %1721 = vst.msk [vmem:[%s226 + $0x48] sm:$0xff] %vm1711, %v1538
      %1722 = vst.msk [vmem:[%s226 + $0x50] sm:$0xff] %vm1711, %v1540
      %1723 = vst.msk [vmem:[%s226 + $0x58] sm:$0xff] %vm1711, %v1542
      %1724 = vst.msk [vmem:[%s226 + $0x60] sm:$0xff] %vm1711, %v1544
      %1725 = vst.msk [vmem:[%s226 + $0x68] sm:$0xff] %vm1711, %v1546
      %1726 = vst.msk [vmem:[%s226 + $0x70] sm:$0xff] %vm1711, %v1548
      %1727 = vst.msk [vmem:[%s226 + $0x78] sm:$0xff] %vm1711, %v1550
      %1728 = vst.msk [vmem:[%s226 + $0x80] sm:$0xff] %vm1711, %v1552
      %1729 = vst.msk [vmem:[%s226 + $0x88] sm:$0xff] %vm1711, %v1554
      %1730 = vst.msk [vmem:[%s226 + $0x90] sm:$0xff] %vm1711, %v1556
      %1731 = vst.msk [vmem:[%s226 + $0x98] sm:$0xff] %vm1711, %v1558
      %1732 = vst.msk [vmem:[%s226 + $0xa0] sm:$0xff] %vm1711, %v1560
      %1733 = vst.msk [vmem:[%s226 + $0xa8] sm:$0xff] %vm1711, %v1562
      %1734 = vst.msk [vmem:[%s226 + $0xb0] sm:$0xff] %vm1711, %v1564
      %1735 = vst.msk [vmem:[%s226 + $0xb8] sm:$0xff] %vm1711, %v1566
      %1736 = vst.msk [vmem:[%s226 + $0xc0] sm:$0xff] %vm1711, %v1568
      %1737 = vst.msk [vmem:[%s226 + $0xc8] sm:$0xff] %vm1711, %v1570
      %1738 = vst.msk [vmem:[%s226 + $0xd0] sm:$0xff] %vm1711, %v1572
      %1739 = vst.msk [vmem:[%s226 + $0xd8] sm:$0xff] %vm1711, %v1574
      %1740 = vst.msk [vmem:[%s226 + $0xe0] sm:$0xff] %vm1711, %v1576
      %1741 = vst.msk [vmem:[%s226 + $0xe8] sm:$0xff] %vm1711, %v1578
      %1742 = vst.msk [vmem:[%s226 + $0xf0] sm:$0xff] %vm1711, %v1580
      %1743 = vst.msk [vmem:[%s226 + $0xf8] sm:$0xff] %vm1711, %v1582
      %1744 = vst.msk [vmem:[%s226 + $0x100] sm:$0xff] %vm1711, %v1584
      %1745 = vst.msk [vmem:[%s226 + $0x108] sm:$0xff] %vm1711, %v1586
      %1746 = vst.msk [vmem:[%s226 + $0x110] sm:$0xff] %vm1711, %v1588
      %1747 = vst.msk [vmem:[%s226 + $0x118] sm:$0xff] %vm1711, %v1590
      %1748 = vst.msk [vmem:[%s226 + $0x120] sm:$0xff] %vm1711, %v1592
      %1749 = vst.msk [vmem:[%s226 + $0x128] sm:$0xff] %vm1711, %v1594
      %1750 = vst.msk [vmem:[%s226 + $0x130] sm:$0xff] %vm1711, %v1596
      %1751 = vst.msk [vmem:[%s226 + $0x138] sm:$0xff] %vm1711, %v1598
      %1752 = vst.msk [vmem:[%s226 + $0x140] sm:$0xff] %vm1711, %v1600
      %1753 = vst.msk [vmem:[%s226 + $0x148] sm:$0xff] %vm1711, %v1602
      %1754 = vst.msk [vmem:[%s226 + $0x150] sm:$0xff] %vm1711, %v1604
      %1755 = vst.msk [vmem:[%s226 + $0x158] sm:$0xff] %vm1711, %v1606
      %1756 = vst.msk [vmem:[%s226 + $0x160] sm:$0xff] %vm1711, %v1608
      %1757 = vst.msk [vmem:[%s226 + $0x168] sm:$0xff] %vm1711, %v1610
      %1758 = vst.msk [vmem:[%s226 + $0x170] sm:$0xff] %vm1711, %v1612
      %1759 = vst.msk [vmem:[%s226 + $0x178] sm:$0xff] %vm1711, %v1614
      %1760 = vst.msk [vmem:[%s226 + $0x180] sm:$0xff] %vm1711, %v1616
      %1761 = vst.msk [vmem:[%s226 + $0x188] sm:$0xff] %vm1711, %v1618
      %1762 = vst.msk [vmem:[%s226 + $0x190] sm:$0xff] %vm1711, %v1620
      %1763 = vst.msk [vmem:[%s226 + $0x198] sm:$0xff] %vm1711, %v1622
      %1764 = vst.msk [vmem:[%s226 + $0x1a0] sm:$0xff] %vm1711, %v1624
      %1765 = vst.msk [vmem:[%s226 + $0x1a8] sm:$0xff] %vm1711, %v1626
      %1766 = vst.msk [vmem:[%s226 + $0x1b0] sm:$0xff] %vm1711, %v1628
      %1767 = vst.msk [vmem:[%s226 + $0x1b8] sm:$0xff] %vm1711, %v1630
      %1768 = vst.msk [vmem:[%s226 + $0x1c0] sm:$0xff] %vm1711, %v1632
      %1769 = vst.msk [vmem:[%s226 + $0x1c8] sm:$0xff] %vm1711, %v1634
      %1770 = vst.msk [vmem:[%s226 + $0x1d0] sm:$0xff] %vm1711, %v1636
      %1771 = vst.msk [vmem:[%s226 + $0x1d8] sm:$0xff] %vm1711, %v1638
      %1772 = vst.msk [vmem:[%s226 + $0x1e0] sm:$0xff] %vm1711, %v1640
      %1773 = vst.msk [vmem:[%s226 + $0x1e8] sm:$0xff] %vm1711, %v1642
      %1774 = vst.msk [vmem:[%s226 + $0x1f0] sm:$0xff] %vm1711, %v1644
      %1775 = vst.msk [vmem:[%s226 + $0x1f8] sm:$0xff] %vm1711, %v1646
      %s1776 = smul.u32 64, %s16
      %p1777 = scmp.lt.s32.totalorder %s1776, 127
      %s1778 = scalar_select %p1777, %s1776, 127
      %s1779 = smul.addr %s1778, 8
      %s1780 = scalar_lea.vmem %s5, %s1779
      // Predicated region
      $region41: #{forward_core.2} parent=39 // pred_check
        %p1781 = pneg %p144
      $region42: #{forward_core.2} parent=39 // pred_check_branch
        %1783 = sbr.rel (%p1781) target = $region44
      $region43: #{forward_core.2} parent=39 // pred_region
        %s1784 = smul.u32 64, %s16
      $region44: #{forward_core.2} parent=39 // pred_fallthru
        _
    $region40: #{forward_core.2} parent=5 // pred_fallthru
      _
    %p1785 = scmp.le.s32.totalorder 2, %s11
    // Predicated region
    $region45: #{forward_core.2} parent=5 // pred_check
      %p1786 = pneg %p1785
    $region46: #{forward_core.2} parent=5 // pred_check_branch
      %1788 = sbr.rel (%p1786) target = $region48
    $region47: #{forward_core.2} parent=5 // pred_region
      %s1789 = ssub.s32 %s11, 2
      // Predicated region
      $region49: #{forward_core.2} parent=47 // pred_check
        %p1790 = pneg %p150
      $region50: #{forward_core.2} parent=47 // pred_check_branch
        %1792 = sbr.rel (%p1790) target = $region52
      $region51: #{forward_core.2} parent=47 // pred_region
        %s1793 = smul.u32 64, %s17
        %p1794 = scmp.lt.s32.totalorder %s1793, 127
        %s1795 = scalar_select %p1794, %s1793, 127
        %s1796 = smul.addr %s1795, 8
        %s1797 = scalar_lea.vmem %s5, %s1796
      $region52: #{forward_core.2} parent=47 // pred_fallthru
        _
    $region48: #{forward_core.2} parent=5 // pred_fallthru
      _
  $region6: #{forward_core.2} parent=0 // loop_footer
    %s15 = sadd.s32 1, %s11
  $region7: #{forward_core.2} parent=0 // loop_footer_branch
    %10 = sbr.rel target = $region3
  $region8: #{forward_core.2} parent=0 // loop_exit
    _

// kernel: forward_core.3
$region0: #{forward_core.3}
  #allocation0 [shape = 'u32[]', space=smem, size = 0x4, offset = 0x4, fixed_abs, tag = 'smem constant byte address 0x4 - core index']
  #allocation1 [shape = 'u32[144,128]{1,0:T(1,128)}', space=vmem, size = 0x12000, scoped, tag = 'internal scratch']
  %s0 = inlined_call_operand.vmem [shape: f32[18,32,32], index: 0, kind: input, shape index: {}]
  %s1 = inlined_call_operand.vmem [shape: f32[18,32,32], index: 1, kind: output, shape index: {}]
  %s2 = sld [smem:[#allocation0]]
  $region37: #{forward_core.3} parent=0
    _
  %s4 = ssub.s32 1, %s2
  %s5 = scalar_select 0, %s4, %s2
  loop: start=0, step=1, limit=20
  $region2: #{forward_core.3} parent=0 // loop_pre_header
    _
  $region3: #{forward_core.3} parent=0 // loop_header
    %s7 = sphi 0, %s11
    %p8 = scmp.ge.s32.totalorder %s7, 20
    %s17 = sphi 0, %s19
    %s20 = sphi 0, %s17
    %s21 = sphi 0, %s20
    %s37 = sphi 0, %s21
    %s43 = sphi 0, %s45
    %s46 = sphi 0, %s43
    %s47 = sphi 0, %s46
    %s63 = sphi 0, %s47
  $region4: #{forward_core.3} parent=0 // loop_header_branch
    %10 = sbr.rel (%p8) target = $region8
  $region5: #{forward_core.3} parent=0 // loop_body
    %s12 = ssub.s32 %s7, 1
    %s13 = ssub.s32 %s7, 2
    %s14 = sadd.s32 %s7, 1
    %s15 = ssub.s32 %s7, %s14
    %p16 = scmp.eq.s32.totalorder %s15, 0
    %s18 = sadd.s32 %s17, 1
    %s19 = scalar_select %p16, %s17, %s18
    %p22 = pneg %p16
    %p23 = scmp.eq.s32.totalorder %s7, 17
    %p24 = por %p22, %p23
    %p25 = scmp.ne.s32.totalorder %s17, %s20
    %p26 = scmp.eq.s32.totalorder %s7, 0
    %p27 = por %p25, %p26
    %p28 = scmp.ne.s32.totalorder %s17, %s20
    %p29 = scmp.eq.s32.totalorder %s12, 17
    %p30 = por %p28, %p29
    %p31 = scmp.ne.s32.totalorder %s20, %s21
    %p32 = scmp.eq.s32.totalorder %s12, 0
    %p33 = por %p31, %p32
    %p34 = scmp.ne.s32.totalorder %s20, %s21
    %p35 = scmp.eq.s32.totalorder %s13, 17
    %p36 = por %p34, %p35
    %p38 = scmp.ne.s32.totalorder %s21, %s37
    %p39 = scmp.eq.s32.totalorder %s13, 0
    %p40 = por %p38, %p39
    %s41 = ssub.s32 %s7, %s14
    %p42 = scmp.eq.s32.totalorder %s41, 0
    %s44 = sadd.s32 %s43, 1
    %s45 = scalar_select %p42, %s43, %s44
    %p48 = pneg %p42
    %p49 = scmp.eq.s32.totalorder %s7, 17
    %p50 = por %p48, %p49
    %p51 = scmp.ne.s32.totalorder %s43, %s46
    %p52 = scmp.eq.s32.totalorder %s7, 0
    %p53 = por %p51, %p52
    %p54 = scmp.ne.s32.totalorder %s43, %s46
    %p55 = scmp.eq.s32.totalorder %s12, 17
    %p56 = por %p54, %p55
    %p57 = scmp.ne.s32.totalorder %s46, %s47
    %p58 = scmp.eq.s32.totalorder %s12, 0
    %p59 = por %p57, %p58
    %p60 = scmp.ne.s32.totalorder %s46, %s47
    %p61 = scmp.eq.s32.totalorder %s13, 17
    %p62 = por %p60, %p61
    %p64 = scmp.ne.s32.totalorder %s47, %s63
    %p65 = scmp.eq.s32.totalorder %s13, 0
    %p66 = por %p64, %p65
    %p67 = scmp.le.s32.totalorder 1, %s7
    %p68 = scmp.lt.s32.totalorder %s7, 19
    %p69 = pnand %p67, %p68
    %p70 = pneg %p69
    // Predicated region
    $region9: #{forward_core.3} parent=5 // pred_check
      _
    $region10: #{forward_core.3} parent=5 // pred_check_branch
      %72 = sbr.rel (%p69) target = $region12
    $region11: #{forward_core.3} parent=5 // pred_region
      %s73 = ssub.s32 %s7, 1
    $region12: #{forward_core.3} parent=5 // pred_fallthru
      _
    %p74 = scmp.lt.s32.totalorder %s7, 18
    // Predicated region
    $region13: #{forward_core.3} parent=5 // pred_check
      %p75 = pneg %p74
    $region14: #{forward_core.3} parent=5 // pred_check_branch
      %77 = sbr.rel (%p75) target = $region16
    $region15: #{forward_core.3} parent=5 // pred_region
      // Predicated region
      $region17: #{forward_core.3} parent=15 // pred_check
        %p78 = pneg %p27
      $region18: #{forward_core.3} parent=15 // pred_check_branch
        %80 = sbr.rel (%p78) target = $region20
      $region19: #{forward_core.3} parent=15 // pred_region
        %p81 = scmp.lt.s32.totalorder %s7, 17
        %s82 = scalar_select %p81, %s7, 17
        %s83 = smul.addr %s82, 4
        %s84 = smul.addr %s83, 8
        %s85 = scalar_lea.vmem %s0, %s84
      $region20: #{forward_core.3} parent=15 // pred_fallthru
        _
    $region16: #{forward_core.3} parent=5 // pred_fallthru
      _
    %p86 = scmp.le.s32.totalorder 1, %s7
    %p87 = scmp.lt.s32.totalorder %s7, 19
    %p88 = pnand %p86, %p87
    %p89 = pneg %p88
    // Predicated region
    $region21: #{forward_core.3} parent=5 // pred_check
      _
    $region22: #{forward_core.3} parent=5 // pred_check_branch
      %91 = sbr.rel (%p88) target = $region24
    $region23: #{forward_core.3} parent=5 // pred_region
      %s92 = ssub.s32 %s7, 1
      %p93 = scmp.lt.s32.totalorder %s12, 17
      %s94 = scalar_select %p93, %s12, 17
      %s95 = smul.addr %s94, 4
      %s96 = smul.addr %s95, 8
      %s97 = scalar_lea.vmem %s0, %s96
      %p98 = pneg %p33
      %p99 = pneg %p30
      %p100 = pneg %p59
      %p101 = pneg %p56
      %p102 = scmp.lt.s32.totalorder %s12, 17
      %s103 = scalar_select %p102, %s12, 17
      %s104 = smul.addr %s103, 4
      %s105 = smul.addr %s104, 8
      %s106 = scalar_lea.vmem %s1, %s105
      %p107 = scmp.lt.s32.totalorder %s12, 17
      %s108 = scalar_select %p107, %s12, 17
      %s109 = smul.addr %s108, 4
      %s110 = smul.addr %s109, 8
      %s111 = scalar_lea.vmem %s0, %s110
      %p112 = scmp.lt.s32.totalorder %s12, 17
      %s113 = scalar_select %p112, %s12, 17
      %s114 = smul.addr %s113, 4
      %s115 = smul.addr %s114, 8
      %s116 = scalar_lea.vmem %s1, %s115
      %v117 = vld [vmem:[%s111] sm:$0xff]
      %v118 = vld [vmem:[%s111 + $0x8] sm:$0xff]
      %v119 = vld [vmem:[%s111 + $0x10] sm:$0xff]
      %v120 = vld [vmem:[%s111 + $0x18] sm:$0xff]
      %v121 = vxor.u32 %v117, 2147483648
      %v122 = vxor.u32 %v118, 2147483648
      %v123 = vxor.u32 %v119, 2147483648
      %v124 = vxor.u32 %v120, 2147483648
      %v125 = vmul.f32 %v121, 1.442695
      %v126 = vpow.pop %v125
      %v127 = vmul.f32 %v122, 1.442695
      %v128 = vpow.pop %v127
      %v129 = vmul.f32 %v123, 1.442695
      %v130 = vpow.pop %v129
      %v131 = vmul.f32 %v124, 1.442695
      %v132 = vpow.pop %v131
      %v133 = vadd.f32 %v126, 1.0
      %v134 = vadd.f32 %v128, 1.0
      %v135 = vadd.f32 %v130, 1.0
      %v136 = vadd.f32 %v132, 1.0
      %v137 = vrcp.pop %v133
      %v138 = vmul.f32 1.0, %v137
      %v139 = vrcp.pop %v134
      %v140 = vmul.f32 1.0, %v139
      %v141 = vrcp.pop %v135
      %v142 = vmul.f32 1.0, %v141
      %v143 = vrcp.pop %v136
      %v144 = vmul.f32 1.0, %v143
      %v145 = vlaneseq
      %v146 = vand.u32 %v145, 127
      %v147 = vlaneseq
      %v148 = vshrl.u32 %v147, 7
      %v149 = vadd.s32 %v148, 8
      %v150 = vadd.s32 %v148, 16
      %v151 = vadd.s32 %v148, 24
      %vm152 = vcmp.ge.s32.totalorder %v146, 1
      %vm153 = vcmask 1047808
      %154 = vrot.lane.b32.xlu0 %v138, 32
      %v155 = vpop.permute.xlu0 %154
      %v156 = vsel %vm153, %v155, %v138
      %157 = vrot.lane.b32.xlu0 %v140, 32
      %v158 = vpop.permute.xlu0 %157
      %v159 = vsel %vm153, %v158, %v140
      %160 = vrot.lane.b32.xlu0 %v142, 32
      %v161 = vpop.permute.xlu0 %160
      %v162 = vsel %vm153, %v161, %v142
      %163 = vrot.lane.b32.xlu0 %v144, 32
      %v164 = vpop.permute.xlu0 %163
      %v165 = vsel %vm153, %v164, %v144
      %166 = vrot.lane.b32.xlu0 %v156, 32
      %v167 = vpop.permute.xlu0 %166
      %168 = vrot.lane.b32.xlu0 %v159, 32
      %v169 = vpop.permute.xlu0 %168
      %170 = vrot.lane.b32.xlu0 %v162, 32
      %v171 = vpop.permute.xlu0 %170
      %172 = vrot.lane.b32.xlu0 %v165, 32
      %v173 = vpop.permute.xlu0 %172
      %v174 = vsel %vm153, %v167, %v138
      %v175 = vsel %vm153, %v169, %v140
      %v176 = vsel %vm153, %v171, %v142
      %v177 = vsel %vm153, %v173, %v144
      %182 = vrot.lane.b32.xlu0 %v174, 97
      %v183 = vpop.permute.xlu0 %182
      %184 = vrot.lane.b32.xlu0 %v175, 97
      %v185 = vpop.permute.xlu0 %184
      %186 = vrot.lane.b32.xlu0 %v176, 97
      %v187 = vpop.permute.xlu0 %186
      %188 = vrot.lane.b32.xlu0 %v177, 97
      %v189 = vpop.permute.xlu0 %188
      %v194 = vsel %vm152, %v183, -1.0
      %v195 = vsel %vm152, %v185, -1.0
      %v196 = vsel %vm152, %v187, -1.0
      %v197 = vsel %vm152, %v189, -1.0
      %vm198 = vcmp.le.s32.totalorder %v146, 30
      %199 = vrot.lane.b32.xlu0 %v174, 127
      %v200 = vpop.permute.xlu0 %199
      %201 = vrot.lane.b32.xlu0 %v175, 127
      %v202 = vpop.permute.xlu0 %201
      %203 = vrot.lane.b32.xlu0 %v176, 127
      %v204 = vpop.permute.xlu0 %203
      %205 = vrot.lane.b32.xlu0 %v177, 127
      %v206 = vpop.permute.xlu0 %205
      %v211 = vsel %vm198, %v200, -1.0
      %v212 = vsel %vm198, %v202, -1.0
      %v213 = vsel %vm198, %v204, -1.0
      %v214 = vsel %vm198, %v206, -1.0
      %v215 = vmax.f32 %v194, %v211
      %v216 = vmax.f32 %v195, %v212
      %v217 = vmax.f32 %v196, %v213
      %v218 = vmax.f32 %v197, %v214
      %v219 = vmax.f32 %v138, %v215
      %v220 = vmax.f32 %v140, %v216
      %v221 = vmax.f32 %v142, %v217
      %v222 = vmax.f32 %v144, %v218
      %vm223 = vcmp.ge.s32.totalorder %v148, 1
      %vm224 = vcmp.ge.s32.totalorder %v149, 1
      %vm225 = vcmp.ge.s32.totalorder %v150, 1
      %vm226 = vcmp.ge.s32.totalorder %v151, 1
      %v227 = vrot.slane %v219, 7
      %v228 = vrot.slane %v220, 7
      %v229 = vrot.slane %v221, 7
      %v230 = vrot.slane %v222, 7
      %vm231 = vcmp.lt.s32.totalorder %v148, 1
      %v232 = vsel %vm231, %v229, %v230
      %v233 = vsel %vm231, %v228, %v229
      %v234 = vsel %vm231, %v227, %v228
      %v235 = vsel %vm231, %v230, %v227
      %v236 = vsel %vm223, %v235, -1.0
      %v237 = vsel %vm224, %v234, -1.0
      %v238 = vsel %vm225, %v233, -1.0
      %v239 = vsel %vm226, %v232, -1.0
      %vm240 = vcmp.le.s32.totalorder %v148, 30
      %vm241 = vcmp.le.s32.totalorder %v149, 30
      %vm242 = vcmp.le.s32.totalorder %v150, 30
      %vm243 = vcmp.le.s32.totalorder %v151, 30
      %v244 = vrot.slane %v219, 1
      %v245 = vrot.slane %v220, 1
      %v246 = vrot.slane %v221, 1
      %v247 = vrot.slane %v222, 1
      %vm248 = vcmp.lt.s32.totalorder %v148, 7
      %v249 = vsel %vm248, %v246, %v247
      %v250 = vsel %vm248, %v245, %v246
      %v251 = vsel %vm248, %v244, %v245
      %v252 = vsel %vm248, %v247, %v244
      %v253 = vsel %vm240, %v251, -1.0
      %v254 = vsel %vm241, %v250, -1.0
      %v255 = vsel %vm242, %v249, -1.0
      %v256 = vsel %vm243, %v252, -1.0
      %v257 = vmax.f32 %v236, %v253
      %v258 = vmax.f32 %v237, %v254
      %v259 = vmax.f32 %v238, %v255
      %v260 = vmax.f32 %v239, %v256
      %v261 = vmax.f32 %v219, %v257
      %v262 = vmax.f32 %v220, %v258
      %v263 = vmax.f32 %v221, %v259
      %v264 = vmax.f32 %v222, %v260
      %vm265 = vcmp.eq.f32.partialorder %v261, %v138
      %vm266 = vcmp.eq.f32.partialorder %v262, %v140
      %vm267 = vcmp.eq.f32.partialorder %v263, %v142
      %vm268 = vcmp.eq.f32.partialorder %v264, %v144
      %v269 = vsel %vm265, 1, 0
      %v270 = vsel %vm266, 1, 0
      %v271 = vsel %vm267, 1, 0
      %v272 = vsel %vm268, 1, 0
      %v273 = vcvt.s32.f32 %v269
      %v274 = vcvt.s32.f32 %v270
      %v275 = vcvt.s32.f32 %v271
      %v276 = vcvt.s32.f32 %v272
      %v277 = vmul.f32 %v138, %v273
      %v278 = vmul.f32 %v140, %v274
      %v279 = vmul.f32 %v142, %v275
      %v280 = vmul.f32 %v144, %v276
      %vm281 = vcmask 261120
      %282 = vst.msk [vmem:[%s116] sm:$0xff] %vm281, %v277
      %283 = vst.msk [vmem:[%s116 + $0x8] sm:$0xff] %vm281, %v278
      %284 = vst.msk [vmem:[%s116 + $0x10] sm:$0xff] %vm281, %v279
      %285 = vst.msk [vmem:[%s116 + $0x18] sm:$0xff] %vm281, %v280
      %p286 = scmp.lt.s32.totalorder %s12, 17
      %s287 = scalar_select %p286, %s12, 17
      %s288 = smul.addr %s287, 4
      %s289 = smul.addr %s288, 8
      %s290 = scalar_lea.vmem %s1, %s289
      // Predicated region
      $region25: #{forward_core.3} parent=23 // pred_check
        %p291 = pneg %p56
      $region26: #{forward_core.3} parent=23 // pred_check_branch
        %293 = sbr.rel (%p291) target = $region28
      $region27: #{forward_core.3} parent=23 // pred_region
        _
      $region28: #{forward_core.3} parent=23 // pred_fallthru
        _
    $region24: #{forward_core.3} parent=5 // pred_fallthru
      _
    %p294 = scmp.le.s32.totalorder 2, %s7
    // Predicated region
    $region29: #{forward_core.3} parent=5 // pred_check
      %p295 = pneg %p294
    $region30: #{forward_core.3} parent=5 // pred_check_branch
      %297 = sbr.rel (%p295) target = $region32
    $region31: #{forward_core.3} parent=5 // pred_region
      %s298 = ssub.s32 %s7, 2
      // Predicated region
      $region33: #{forward_core.3} parent=31 // pred_check
        %p299 = pneg %p62
      $region34: #{forward_core.3} parent=31 // pred_check_branch
        %301 = sbr.rel (%p299) target = $region36
      $region35: #{forward_core.3} parent=31 // pred_region
        %p302 = scmp.lt.s32.totalorder %s13, 17
        %s303 = scalar_select %p302, %s13, 17
        %s304 = smul.addr %s303, 4
        %s305 = smul.addr %s304, 8
        %s306 = scalar_lea.vmem %s1, %s305
      $region36: #{forward_core.3} parent=31 // pred_fallthru
        _
    $region32: #{forward_core.3} parent=5 // pred_fallthru
      _
  $region6: #{forward_core.3} parent=0 // loop_footer
    %s11 = sadd.s32 1, %s7
  $region7: #{forward_core.3} parent=0 // loop_footer_branch
    %6 = sbr.rel target = $region3
  $region8: #{forward_core.3} parent=0 // loop_exit
    _

</llo_original>
